<compile_context>
chip_gen: v6e
topology: v6e:2x2x1
jax: 0.10.0
libtpu: 0.0.40
codegen_flags: <defaults>
</compile_context>

<pallas_src>
import functools

import jax
import jax.numpy as jnp
import numpy as np
from jax.experimental import pallas as pl
from jax.experimental.pallas import tpu as pltpu


# ---------------------------------------------------------------------------
# in-kernel math helpers
# ---------------------------------------------------------------------------
_ERF_A = (0.254829592, -0.284496736, 1.421413741, -1.453152027, 1.061405429)
_ERF_P = 0.3275911
_INV_SQRT2 = 0.7071067811865476
_SQRT_2_OVER_PI = 0.7978845608028654


def _erf(x):
    """Abramowitz & Stegun 7.1.26 erf, |abs err| <= ~1.5e-7 in f32."""
    a1, a2, a3, a4, a5 = _ERF_A
    sgn = jnp.where(x >= 0.0, 1.0, -1.0)
    ax = jnp.abs(x)
    # exact reciprocal for parity with nn.GELU(approximate='none'); the
    # divide issues on the EUP slot either way, so approx=True is not needed.
    t = pl.reciprocal(1.0 + _ERF_P * ax, approx=False)
    poly = t * (a1 + t * (a2 + t * (a3 + t * (a4 + t * a5))))
    return sgn * (1.0 - poly * jnp.exp(-ax * ax))


def _gelu(x, activation):
    if activation == 'gelu_tanh':
        # tanh approximation: one EUP tanh + a few VALU ops.  Use when the
        # VALU binds and exact parity with torch GELU is not required.
        return 0.5 * x * (1.0 + jnp.tanh(
            _SQRT_2_OVER_PI * (x + 0.044715 * x * x * x)))
    # default: exact GELU, matches nn.GELU(approximate='none').
    return 0.5 * x * (1.0 + _erf(x * _INV_SQRT2))


def _dwconv(x, w, b, *, padding):
    """Depthwise Conv1d along time (sublanes), f32 accumulation, mask-free.

    x: (Tw, Cp) f32 window that already contains >= 2*padding halo rows on
    each side with the correct values (zeros beyond the sequence edges), so
    no per-tap edge masks are needed.  Tap shifts use pltpu.roll (XLU slot,
    otherwise idle); wrap-around rows only ever land in halo rows that the
    caller never consumes.
    """
    Tw, _ = x.shape
    K = w.shape[0]
    acc = jnp.zeros_like(x)
    for k in range(K):                       # K small & static -> unrolled
        off = k - padding                    # tap reads x[t + off]
        shifted = x if off == 0 else pltpu.roll(x, shift=(-off) % Tw, axis=0)
        acc = acc + shifted * w[k:k + 1, :]
    return acc + b


# ---------------------------------------------------------------------------
# Pallas kernel: one (batch, T-chunk) tile per grid step
# ---------------------------------------------------------------------------
def star_block_kernel(x_ref, dw1w_ref, dw1b_ref, f12w_ref, f12b_ref,
                      gw_ref, gb_ref, dw2w_ref, dw2b_ref, o_ref,
                      *, padding, mode, activation, t_valid, t_chunk, hpad,
                      hp, compute_dtype):
    tw = t_chunk + 2 * hpad
    # start of this chunk's window inside the (halo-padded) resident x block;
    # t_chunk is a multiple of the sublane quantum -> aligned vector loads.
    t0 = pl.multiple_of(pl.program_id(1) * t_chunk, t_chunk)
    xw = x_ref[0, pl.ds(t0, tw), :].astype(jnp.float32)            # (Tw, Cp)

    # dwconv (depthwise, groups=dim): halo rows carry the conv's zero padding.
    h = _dwconv(xw, dw1w_ref[...], dw1b_ref[...], padding=padding)

    # fused f1|f2: one (Cp, 2Hp) 1x1-conv matmul on the MXU, f32 accumulation.
    y12 = jnp.dot(h.astype(compute_dtype), f12w_ref[...],
                  preferred_element_type=jnp.float32) + f12b_ref[...]
    y1 = y12[:, :hp]
    y2 = y12[:, hp:]
    a = _gelu(y1, activation)
    y = a + y2 if mode == 'sum' else a * y2

    # g: 1x1 conv back down to dim.
    z = jnp.dot(y.astype(compute_dtype), gw_ref[...],
                preferred_element_type=jnp.float32) + gb_ref[...]

    # Zero z rows outside [0, T): reproduces dwconv2's implicit zero padding
    # at the sequence edges and removes bias contamination of padded tail
    # rows.  Single (Tw,1) iota + one select (could be wrapped in a
    # boundary-chunk lax.cond if the VALU slot ever becomes the bottleneck).
    row = jax.lax.broadcasted_iota(jnp.int32, (tw, 1), 0)
    orig_t = row + (t0 - hpad)
    z = jnp.where(jnp.logical_and(orig_t >= 0, orig_t < t_valid), z, 0.0)

    # dwconv2; only the interior t_chunk rows of the window are written out.
    out = _dwconv(z, dw2w_ref[...], dw2b_ref[...], padding=padding)
    o_ref[0] = out[hpad:hpad + t_chunk, :].astype(o_ref.dtype)


# ---------------------------------------------------------------------------
# wrapper: per-generation tiling, lane/sublane padding, weight packing
# ---------------------------------------------------------------------------
def _round_up(v, m):
    return ((v + m - 1) // m) * m


def _pad2(arr, rows, cols):
    r, c = arr.shape
    return jnp.pad(arr, ((0, rows - r), (0, cols - c)))


def _device_defaults():
    """Per-TPU-generation tiling defaults (see review notes)."""
    try:
        kind = jax.devices()[0].device_kind.lower()
    except Exception:
        kind = ""
    if "v7" in kind:
        # v7x: 64 MiB VMEM/TC, 2x256 MXU, 2 TCs -> smaller T chunk.
        return dict(lane_align=256, t_chunk=256, vmem_limit=48 << 20)
    if "v6" in kind or "trillium" in kind:
        # v6e: 128 MiB VMEM, 2x256 MXU -> bigger T chunk, raised scoped limit.
        return dict(lane_align=256, t_chunk=512, vmem_limit=96 << 20)
    # v5e / v5p / v4 / unknown: 128-wide MXU tiles, conservative chunk, raise
    # the small (16/32 MiB) default scoped VMEM limit explicitly.
    return dict(lane_align=128, t_chunk=256, vmem_limit=64 << 20)


def star_block(x, params, *, kernel_size=7, padding=3, mode='sum',
               activation='gelu', matmul_dtype=None, t_chunk=None,
               lane_align=None, vmem_limit_bytes=None):
    """StarBlock forward.  x: (B, T, C) -> (B, T, C).

    Params (PyTorch-equivalent, pre-transposed layouts):
      dw1_w/dw2_w: (K, C)  == conv.weight[c, 0, k] as [k, c]
      dw1_b/dw2_b: (1, C)
      f1_w/f2_w:   (C, H)  == conv.weight[h, c, 0] as [c, h]   (H = E*C)
      f1_b/f2_b:   (1, H)
      g_w:         (H, C)
      g_b:         (1, C)
    """
    B, T, C = x.shape
    H = params['f1_w'].shape[1]
    K = params['dw1_w'].shape[0]
    assert K == kernel_size
    assert 2 * padding == kernel_size - 1, "only length-preserving convs supported"
    assert mode in ('sum', 'mul')

    f32 = jnp.float32
    # MXU dtype: bf16 inputs -> bf16 matmuls (native MXU rate on v5e/v6e/v7x);
    # f32 inputs stay f32 unless the caller opts in (numerics change slightly).
    mdt = matmul_dtype
    if mdt is None:
        mdt = jnp.bfloat16 if x.dtype == jnp.bfloat16 else f32

    dev = _device_defaults()
    lane = lane_align if lane_align is not None else dev['lane_align']
    if t_chunk is None:
        t_chunk = dev['t_chunk']
    if vmem_limit_bytes is None:
        vmem_limit_bytes = dev['vmem_limit']

    # sublane quantum: 8 rows for 4-byte dtypes, 16 for bf16/f16 (packed vregs)
    sub = 8 if x.dtype.itemsize >= 4 else 16
    Cp = _round_up(C, lane)
    Hp = _round_up(H, lane)
    hpad = _round_up(max(2 * padding, sub), sub)    # stored halo >= 2*padding
    Tt = _round_up(min(t_chunk, _round_up(T, sub)), sub)
    NT = pl.cdiv(T, Tt)
    Tout = NT * Tt
    Tpad = Tout + 2 * hpad

    # x laid out (time on sublanes, channels on lanes): both module Transposes
    # cancel.  Zero halo/tail padding is exact: the first dwconv's implicit
    # zero padding comes for free from these rows.
    xp = jnp.pad(x, ((0, 0), (hpad, Tpad - T - hpad), (0, Cp - C)))

    # depthwise conv params stay f32 (VPU accumulation path)
    dw1_w = _pad2(params['dw1_w'].astype(f32), K, Cp)
    dw1_b = _pad2(params['dw1_b'].astype(f32), 1, Cp)
    dw2_w = _pad2(params['dw2_w'].astype(f32), K, Cp)
    dw2_b = _pad2(params['dw2_b'].astype(f32), 1, Cp)

    # fused f1|f2 weight (Cp, 2Hp): cols [0:Hp]=f1, [Hp:2Hp]=f2.
    f12_w = jnp.concatenate([_pad2(params['f1_w'].astype(mdt), Cp, Hp),
                             _pad2(params['f2_w'].astype(mdt), Cp, Hp)], axis=1)
    f12_b = jnp.concatenate([_pad2(params['f1_b'].astype(f32), 1, Hp),
                             _pad2(params['f2_b'].astype(f32), 1, Hp)], axis=1)
    g_w = _pad2(params['g_w'].astype(mdt), Hp, Cp)
    g_b = _pad2(params['g_b'].astype(f32), 1, Cp)

    kern = functools.partial(
        star_block_kernel, padding=padding, mode=mode, activation=activation,
        t_valid=T, t_chunk=Tt, hpad=hpad, hp=Hp, compute_dtype=mdt)

    # advisory cost estimate so XLA can schedule around the custom call
    flops = int(4 * B * Tout * Cp * Hp          # fused f1|f2 matmul
                + 2 * B * Tout * Hp * Cp        # g matmul
                + 4 * B * Tout * Cp * K)        # two depthwise convs
    transcendentals = int(B * Tout * Hp)        # one exp/tanh per GELU element
    bytes_accessed = int((xp.size + B * Tout * Cp) * x.dtype.itemsize
                         + (f12_w.size + g_w.size) * np.dtype(mdt).itemsize
                         + (dw1_w.size + dw2_w.size + dw1_b.size + dw2_b.size
                            + f12_b.size + g_b.size) * 4)
    ce = pl.CostEstimate(flops=flops, transcendentals=transcendentals,
                         bytes_accessed=bytes_accessed)

    def _build(single_buffer_weights):
        if single_buffer_weights:
            # Constant-index weights: single-buffered so f12_w/g_w do not
            # burn a dead second VMEM copy (frees room for a bigger T chunk).
            def wspec(shape):
                return pl.BlockSpec(shape, lambda b, t: (0, 0),
                                    pipeline_mode=pl.Buffered(1))
        else:
            def wspec(shape):
                return pl.BlockSpec(shape, lambda b, t: (0, 0))

        grid_spec = pltpu.PrefetchScalarGridSpec(
            num_scalar_prefetch=0,
            grid=(B, NT),                        # T chunks are independent
            in_specs=[
                # full halo-padded x stays resident per batch element (small,
                # I/O dtype); only the f32 intermediates are chunked over T.
                pl.BlockSpec((1, Tpad, Cp), lambda b, t: (b, 0, 0)),
                wspec((K, Cp)), wspec((1, Cp)),             # dwconv  w, b
                wspec((Cp, 2 * Hp)), wspec((1, 2 * Hp)),    # f1|f2   w, b
                wspec((Hp, Cp)), wspec((1, Cp)),            # g       w, b
                wspec((K, Cp)), wspec((1, Cp)),             # dwconv2 w, b
            ],
            out_specs=pl.BlockSpec((1, Tt, Cp), lambda b, t: (b, t, 0)),
        )
        return pl.pallas_call(
            kern,
            out_shape=jax.ShapeDtypeStruct((B, Tout, Cp), x.dtype),
            grid_spec=grid_spec,
            compiler_params=pltpu.CompilerParams(
                # halo is recomputed and output blocks are disjoint, so both
                # axes are legally parallel (v7x megacore shards B x T-chunks).
                dimension_semantics=("parallel", "parallel"),
                vmem_limit_bytes=vmem_limit_bytes),
            cost_estimate=ce,
        )

    args = (xp, dw1_w, dw1_b, f12_w, f12_b, g_w, g_b, dw2_w, dw2_b)
    try:
        out = _build(True)(*args)
    except Exception:
        # pipeline_mode=pl.Buffered(1) not supported by this jax version ->
        # fall back to default double-buffered weight operands.
        out = _build(False)(*args)

    return out[:, :T, :C]


# ---------------------------------------------------------------------------
# pure-JAX reference (mirrors the PyTorch forward) for a correctness check
# ---------------------------------------------------------------------------
def star_block_ref(x, params, *, padding=3, mode='sum'):
    xt = jnp.transpose(x, (0, 2, 1))                    # (B, C, T) = transpose(1,2)

    def dw(z, w, b):
        wt = jnp.transpose(w, (1, 0))[:, None, :]       # (C, 1, K) torch layout
        out = jax.lax.conv_general_dilated(
            z, wt, window_strides=(1,), padding=[(padding, padding)],
            dimension_numbers=('NCH', 'OIH', 'NCH'),
            feature_group_count=z.shape[1])
        return out + b.reshape(1, -1, 1)

    h = dw(xt, params['dw1_w'], params['dw1_b'])
    y1 = jnp.einsum('bct,ce->bet', h, params['f1_w']) + params['f1_b'].reshape(1, -1, 1)
    y2 = jnp.einsum('bct,ce->bet', h, params['f2_w']) + params['f2_b'].reshape(1, -1, 1)
    y = jax.nn.gelu(y1, approximate=False) + y2 if mode == 'sum' \
        else jax.nn.gelu(y1, approximate=False) * y2
    z = jnp.einsum('bet,ec->bct', y, params['g_w']) + params['g_b'].reshape(1, -1, 1)
    out = dw(z, params['dw2_w'], params['dw2_b'])
    return jnp.transpose(out, (0, 2, 1))                # back to (B, T, C)


# ---------------------------------------------------------------------------
if __name__ == "__main__":
    # Small but non-trivial shapes: T=50 is not a multiple of the forced
    # T chunk, so the run exercises multiple T chunks, the halo recompute,
    # lane/sublane zero-padding, and the tail-row masking path.
    B, T, C, E, K, P = 2, 50, 6, 4, 7, 3      # batch, seq, dim, expansion, kernel, pad
    H = E * C

    key = jax.random.PRNGKey(0)
    keys = jax.random.split(key, 11)
    params = {
        'dw1_w': 0.2 * jax.random.normal(keys[0], (K, C), jnp.float32),
        'dw1_b': 0.1 * jax.random.normal(keys[1], (1, C), jnp.float32),
        'f1_w':  0.2 * jax.random.normal(keys[2], (C, H), jnp.float32),
        'f1_b':  0.1 * jax.random.normal(keys[3], (1, H), jnp.float32),
        'f2_w':  0.2 * jax.random.normal(keys[4], (C, H), jnp.float32),
        'f2_b':  0.1 * jax.random.normal(keys[5], (1, H), jnp.float32),
        'g_w':   0.2 * jax.random.normal(keys[6], (H, C), jnp.float32),
        'g_b':   0.1 * jax.random.normal(keys[7], (1, C), jnp.float32),
        'dw2_w': 0.2 * jax.random.normal(keys[8], (K, C), jnp.float32),
        'dw2_b': 0.1 * jax.random.normal(keys[9], (1, C), jnp.float32),
    }
    x = jax.random.normal(keys[10], (B, T, C), jnp.float32)

    out = star_block(x, params, kernel_size=K, padding=P, mode='sum',
                     t_chunk=16)              # force 4 T chunks at this tiny T
    out = jax.block_until_ready(out)

    ref = star_block_ref(x, params, padding=P, mode='sum')
    assert out.shape == (B, T, C)
    np.testing.assert_allclose(np.asarray(out), np.asarray(ref),
                               atol=1e-4, rtol=1e-3)
    print("KERNEL_OK")
</pallas_src>

<mosaic_0001>
module attributes {stable_mosaic.version = 11 : i64} {
  func.func @star_block_kernel(%arg0: i32, %arg1: i32, %arg2: memref<1x80x128xf32, #tpu.memory_space<vmem>>, %arg3: memref<7x128xf32, #tpu.memory_space<vmem>>, %arg4: memref<1x128xf32, #tpu.memory_space<vmem>>, %arg5: memref<128x256xf32, #tpu.memory_space<vmem>>, %arg6: memref<1x256xf32, #tpu.memory_space<vmem>>, %arg7: memref<128x128xf32, #tpu.memory_space<vmem>>, %arg8: memref<1x128xf32, #tpu.memory_space<vmem>>, %arg9: memref<7x128xf32, #tpu.memory_space<vmem>>, %arg10: memref<1x128xf32, #tpu.memory_space<vmem>>, %arg11: memref<1x16x128xf32, #tpu.memory_space<vmem>>) attributes {dimension_semantics = [#tpu.dimension_semantics<parallel>, #tpu.dimension_semantics<parallel>], iteration_bounds = array<i64: 2, 4>, scalar_prefetch = 0 : i64, scratch_operands = 0 : i64, tpu.core_type = #tpu.core_type<tc>, window_params = [{transform_indices = @transform_0, window_bounds = array<i64: 1, 80, 128>}, {pipeline_mode = #tpu.pipeline_mode<synchronous>, transform_indices = @transform_1, window_bounds = array<i64: 7, 128>}, {pipeline_mode = #tpu.pipeline_mode<synchronous>, transform_indices = @transform_2, window_bounds = array<i64: 1, 128>}, {pipeline_mode = #tpu.pipeline_mode<synchronous>, transform_indices = @transform_3, window_bounds = array<i64: 128, 256>}, {pipeline_mode = #tpu.pipeline_mode<synchronous>, transform_indices = @transform_4, window_bounds = array<i64: 1, 256>}, {pipeline_mode = #tpu.pipeline_mode<synchronous>, transform_indices = @transform_5, window_bounds = array<i64: 128, 128>}, {pipeline_mode = #tpu.pipeline_mode<synchronous>, transform_indices = @transform_6, window_bounds = array<i64: 1, 128>}, {pipeline_mode = #tpu.pipeline_mode<synchronous>, transform_indices = @transform_7, window_bounds = array<i64: 7, 128>}, {pipeline_mode = #tpu.pipeline_mode<synchronous>, transform_indices = @transform_8, window_bounds = array<i64: 1, 128>}, {transform_indices = @transform_9, window_bounds = array<i64: 1, 16, 128>}]} {
    %c16_i32 = arith.constant 16 : i32
    %0 = arith.muli %arg1, %c16_i32 : i32
    %1 = tpu.assume_multiple %0, 16 : i32
    %c0 = arith.constant 0 : index
    %2 = arith.index_cast %1 : i32 to index
    %c0_0 = arith.constant 0 : index
    %3 = vector.load %arg2[%c0, %2, %c0_0] : memref<1x80x128xf32, #tpu.memory_space<vmem>>, vector<1x32x128xf32>
    %4 = vector.shape_cast %3 : vector<1x32x128xf32> to vector<32x128xf32>
    %c0_1 = arith.constant 0 : index
    %c0_2 = arith.constant 0 : index
    %5 = vector.load %arg3[%c0_1, %c0_2] : memref<7x128xf32, #tpu.memory_space<vmem>>, vector<7x128xf32>
    %c0_3 = arith.constant 0 : index
    %c0_4 = arith.constant 0 : index
    %6 = vector.load %arg4[%c0_3, %c0_4] : memref<1x128xf32, #tpu.memory_space<vmem>>, vector<1x128xf32>
    %cst = arith.constant 0.000000e+00 : f32
    %7 = vector.broadcast %cst : f32 to vector<32x128xf32>
    %c3_i32 = arith.constant 3 : i32
    %8 = tpu.dynamic_rotate %4 by %c3_i32 dim 0 : vector<32x128xf32>, i32 -> vector<32x128xf32>
    %9 = vector.extract_strided_slice %5 {offsets = [0, 0], sizes = [1, 128], strides = [1, 1]} : vector<7x128xf32> to vector<1x128xf32>
    %10 = vector.broadcast %9 : vector<1x128xf32> to vector<32x128xf32>
    %11 = arith.mulf %8, %10 : vector<32x128xf32>
    %12 = arith.addf %7, %11 : vector<32x128xf32>
    %c2_i32 = arith.constant 2 : i32
    %13 = tpu.dynamic_rotate %4 by %c2_i32 dim 0 : vector<32x128xf32>, i32 -> vector<32x128xf32>
    %14 = vector.extract_strided_slice %5 {offsets = [1, 0], sizes = [1, 128], strides = [1, 1]} : vector<7x128xf32> to vector<1x128xf32>
    %15 = vector.broadcast %14 : vector<1x128xf32> to vector<32x128xf32>
    %16 = arith.mulf %13, %15 : vector<32x128xf32>
    %17 = arith.addf %12, %16 : vector<32x128xf32>
    %c1_i32 = arith.constant 1 : i32
    %18 = tpu.dynamic_rotate %4 by %c1_i32 dim 0 : vector<32x128xf32>, i32 -> vector<32x128xf32>
    %19 = vector.extract_strided_slice %5 {offsets = [2, 0], sizes = [1, 128], strides = [1, 1]} : vector<7x128xf32> to vector<1x128xf32>
    %20 = vector.broadcast %19 : vector<1x128xf32> to vector<32x128xf32>
    %21 = arith.mulf %18, %20 : vector<32x128xf32>
    %22 = arith.addf %17, %21 : vector<32x128xf32>
    %23 = vector.extract_strided_slice %5 {offsets = [3, 0], sizes = [1, 128], strides = [1, 1]} : vector<7x128xf32> to vector<1x128xf32>
    %24 = vector.broadcast %23 : vector<1x128xf32> to vector<32x128xf32>
    %25 = arith.mulf %4, %24 : vector<32x128xf32>
    %26 = arith.addf %22, %25 : vector<32x128xf32>
    %c31_i32 = arith.constant 31 : i32
    %27 = tpu.dynamic_rotate %4 by %c31_i32 dim 0 : vector<32x128xf32>, i32 -> vector<32x128xf32>
    %28 = vector.extract_strided_slice %5 {offsets = [4, 0], sizes = [1, 128], strides = [1, 1]} : vector<7x128xf32> to vector<1x128xf32>
    %29 = vector.broadcast %28 : vector<1x128xf32> to vector<32x128xf32>
    %30 = arith.mulf %27, %29 : vector<32x128xf32>
    %31 = arith.addf %26, %30 : vector<32x128xf32>
    %c30_i32 = arith.constant 30 : i32
    %32 = tpu.dynamic_rotate %4 by %c30_i32 dim 0 : vector<32x128xf32>, i32 -> vector<32x128xf32>
    %33 = vector.extract_strided_slice %5 {offsets = [5, 0], sizes = [1, 128], strides = [1, 1]} : vector<7x128xf32> to vector<1x128xf32>
    %34 = vector.broadcast %33 : vector<1x128xf32> to vector<32x128xf32>
    %35 = arith.mulf %32, %34 : vector<32x128xf32>
    %36 = arith.addf %31, %35 : vector<32x128xf32>
    %c29_i32 = arith.constant 29 : i32
    %37 = tpu.dynamic_rotate %4 by %c29_i32 dim 0 : vector<32x128xf32>, i32 -> vector<32x128xf32>
    %38 = vector.extract_strided_slice %5 {offsets = [6, 0], sizes = [1, 128], strides = [1, 1]} : vector<7x128xf32> to vector<1x128xf32>
    %39 = vector.broadcast %38 : vector<1x128xf32> to vector<32x128xf32>
    %40 = arith.mulf %37, %39 : vector<32x128xf32>
    %41 = arith.addf %36, %40 : vector<32x128xf32>
    %42 = vector.broadcast %6 : vector<1x128xf32> to vector<32x128xf32>
    %43 = arith.addf %41, %42 : vector<32x128xf32>
    %c0_5 = arith.constant 0 : index
    %c0_6 = arith.constant 0 : index
    %44 = vector.load %arg5[%c0_5, %c0_6] : memref<128x256xf32, #tpu.memory_space<vmem>>, vector<128x256xf32>
    %cst_7 = arith.constant dense<0.000000e+00> : vector<32x256xf32>
    %45 = tpu.matmul %43, %44, %cst_7 {dimension_numbers = #tpu.dot_dimension_numbers<[1], [0], [0], [1], [0, 0, 1, 1], [], []>} : vector<32x128xf32>, vector<128x256xf32>, vector<32x256xf32> -> vector<32x256xf32>
    %c0_8 = arith.constant 0 : index
    %c0_9 = arith.constant 0 : index
    %46 = vector.load %arg6[%c0_8, %c0_9] : memref<1x256xf32, #tpu.memory_space<vmem>>, vector<1x256xf32>
    %47 = vector.broadcast %46 : vector<1x256xf32> to vector<32x256xf32>
    %48 = arith.addf %45, %47 : vector<32x256xf32>
    %49 = vector.extract_strided_slice %48 {offsets = [0, 0], sizes = [32, 128], strides = [1, 1]} : vector<32x256xf32> to vector<32x128xf32>
    %50 = vector.extract_strided_slice %48 {offsets = [0, 128], sizes = [32, 128], strides = [1, 1]} : vector<32x256xf32> to vector<32x128xf32>
    %cst_10 = arith.constant 5.000000e-01 : f32
    %51 = vector.broadcast %cst_10 : f32 to vector<32x128xf32>
    %52 = arith.mulf %51, %49 : vector<32x128xf32>
    %cst_11 = arith.constant 0.707106769 : f32
    %53 = vector.broadcast %cst_11 : f32 to vector<32x128xf32>
    %54 = arith.mulf %49, %53 : vector<32x128xf32>
    %cst_12 = arith.constant 0.000000e+00 : f32
    %55 = vector.broadcast %cst_12 : f32 to vector<32x128xf32>
    %56 = arith.cmpf oge, %54, %55 : vector<32x128xf32>
    %cst_13 = arith.constant 1.000000e+00 : f32
    %cst_14 = arith.constant -1.000000e+00 : f32
    %57 = vector.broadcast %cst_13 : f32 to vector<32x128xf32>
    %58 = vector.broadcast %cst_14 : f32 to vector<32x128xf32>
    %59 = arith.select %56, %57, %58 : vector<32x128xi1>, vector<32x128xf32>
    %60 = math.absf %54 : vector<32x128xf32>
    %cst_15 = arith.constant 0.327591091 : f32
    %61 = vector.broadcast %cst_15 : f32 to vector<32x128xf32>
    %62 = arith.mulf %61, %60 : vector<32x128xf32>
    %cst_16 = arith.constant 1.000000e+00 : f32
    %63 = vector.broadcast %cst_16 : f32 to vector<32x128xf32>
    %64 = arith.addf %63, %62 : vector<32x128xf32>
    %65 = tpu.reciprocal %64 : vector<32x128xf32> -> vector<32x128xf32>
    %cst_17 = arith.constant 1.06140542 : f32
    %66 = vector.broadcast %cst_17 : f32 to vector<32x128xf32>
    %67 = arith.mulf %65, %66 : vector<32x128xf32>
    %cst_18 = arith.constant -1.45315206 : f32
    %68 = vector.broadcast %cst_18 : f32 to vector<32x128xf32>
    %69 = arith.addf %68, %67 : vector<32x128xf32>
    %70 = arith.mulf %65, %69 : vector<32x128xf32>
    %cst_19 = arith.constant 1.42141378 : f32
    %71 = vector.broadcast %cst_19 : f32 to vector<32x128xf32>
    %72 = arith.addf %71, %70 : vector<32x128xf32>
    %73 = arith.mulf %65, %72 : vector<32x128xf32>
    %cst_20 = arith.constant -0.284496725 : f32
    %74 = vector.broadcast %cst_20 : f32 to vector<32x128xf32>
    %75 = arith.addf %74, %73 : vector<32x128xf32>
    %76 = arith.mulf %65, %75 : vector<32x128xf32>
    %cst_21 = arith.constant 0.254829586 : f32
    %77 = vector.broadcast %cst_21 : f32 to vector<32x128xf32>
    %78 = arith.addf %77, %76 : vector<32x128xf32>
    %79 = arith.mulf %65, %78 : vector<32x128xf32>
    %cst_22 = arith.constant 0.000000e+00 : f32
    %80 = vector.broadcast %cst_22 : f32 to vector<32x128xf32>
    %81 = arith.subf %80, %60 : vector<32x128xf32>
    %82 = arith.mulf %81, %60 : vector<32x128xf32>
    %83 = math.exp %82 : vector<32x128xf32>
    %84 = arith.mulf %79, %83 : vector<32x128xf32>
    %cst_23 = arith.constant 1.000000e+00 : f32
    %85 = vector.broadcast %cst_23 : f32 to vector<32x128xf32>
    %86 = arith.subf %85, %84 : vector<32x128xf32>
    %87 = arith.mulf %59, %86 : vector<32x128xf32>
    %cst_24 = arith.constant 1.000000e+00 : f32
    %88 = vector.broadcast %cst_24 : f32 to vector<32x128xf32>
    %89 = arith.addf %88, %87 : vector<32x128xf32>
    %90 = arith.mulf %52, %89 : vector<32x128xf32>
    %91 = arith.addf %90, %50 : vector<32x128xf32>
    %c0_25 = arith.constant 0 : index
    %c0_26 = arith.constant 0 : index
    %92 = vector.load %arg7[%c0_25, %c0_26] : memref<128x128xf32, #tpu.memory_space<vmem>>, vector<128x128xf32>
    %cst_27 = arith.constant dense<0.000000e+00> : vector<32x128xf32>
    %93 = tpu.matmul %91, %92, %cst_27 {dimension_numbers = #tpu.dot_dimension_numbers<[1], [0], [0], [1], [0, 0, 1, 1], [], []>} : vector<32x128xf32>, vector<128x128xf32>, vector<32x128xf32> -> vector<32x128xf32>
    %c0_28 = arith.constant 0 : index
    %c0_29 = arith.constant 0 : index
    %94 = vector.load %arg8[%c0_28, %c0_29] : memref<1x128xf32, #tpu.memory_space<vmem>>, vector<1x128xf32>
    %95 = vector.broadcast %94 : vector<1x128xf32> to vector<32x128xf32>
    %96 = arith.addf %93, %95 : vector<32x128xf32>
    %97 = tpu.iota {dimensions = array<i32: 0>} : vector<32x1xi32>
    %c8_i32 = arith.constant 8 : i32
    %98 = arith.subi %1, %c8_i32 : i32
    %99 = vector.broadcast %98 : i32 to vector<32x1xi32>
    %100 = arith.addi %97, %99 : vector<32x1xi32>
    %c0_i32 = arith.constant 0 : i32
    %101 = vector.broadcast %c0_i32 : i32 to vector<32x1xi32>
    %102 = arith.cmpi sge, %100, %101 : vector<32x1xi32>
    %c50_i32 = arith.constant 50 : i32
    %103 = vector.broadcast %c50_i32 : i32 to vector<32x1xi32>
    %104 = arith.cmpi slt, %100, %103 : vector<32x1xi32>
    %105 = arith.andi %102, %104 : vector<32x1xi1>
    %cst_30 = arith.constant 0.000000e+00 : f32
    %106 = vector.shape_cast %105 : vector<32x1xi1> to vector<32x1xi1>
    %107 = vector.broadcast %106 : vector<32x1xi1> to vector<32x128xi1>
    %108 = vector.broadcast %cst_30 : f32 to vector<32x128xf32>
    %109 = arith.select %107, %96, %108 : vector<32x128xi1>, vector<32x128xf32>
    %c0_31 = arith.constant 0 : index
    %c0_32 = arith.constant 0 : index
    %110 = vector.load %arg9[%c0_31, %c0_32] : memref<7x128xf32, #tpu.memory_space<vmem>>, vector<7x128xf32>
    %c0_33 = arith.constant 0 : index
    %c0_34 = arith.constant 0 : index
    %111 = vector.load %arg10[%c0_33, %c0_34] : memref<1x128xf32, #tpu.memory_space<vmem>>, vector<1x128xf32>
    %cst_35 = arith.constant 0.000000e+00 : f32
    %112 = vector.broadcast %cst_35 : f32 to vector<32x128xf32>
    %c3_i32_36 = arith.constant 3 : i32
    %113 = tpu.dynamic_rotate %109 by %c3_i32_36 dim 0 : vector<32x128xf32>, i32 -> vector<32x128xf32>
    %114 = vector.extract_strided_slice %110 {offsets = [0, 0], sizes = [1, 128], strides = [1, 1]} : vector<7x128xf32> to vector<1x128xf32>
    %115 = vector.broadcast %114 : vector<1x128xf32> to vector<32x128xf32>
    %116 = arith.mulf %113, %115 : vector<32x128xf32>
    %117 = arith.addf %112, %116 : vector<32x128xf32>
    %c2_i32_37 = arith.constant 2 : i32
    %118 = tpu.dynamic_rotate %109 by %c2_i32_37 dim 0 : vector<32x128xf32>, i32 -> vector<32x128xf32>
    %119 = vector.extract_strided_slice %110 {offsets = [1, 0], sizes = [1, 128], strides = [1, 1]} : vector<7x128xf32> to vector<1x128xf32>
    %120 = vector.broadcast %119 : vector<1x128xf32> to vector<32x128xf32>
    %121 = arith.mulf %118, %120 : vector<32x128xf32>
    %122 = arith.addf %117, %121 : vector<32x128xf32>
    %c1_i32_38 = arith.constant 1 : i32
    %123 = tpu.dynamic_rotate %109 by %c1_i32_38 dim 0 : vector<32x128xf32>, i32 -> vector<32x128xf32>
    %124 = vector.extract_strided_slice %110 {offsets = [2, 0], sizes = [1, 128], strides = [1, 1]} : vector<7x128xf32> to vector<1x128xf32>
    %125 = vector.broadcast %124 : vector<1x128xf32> to vector<32x128xf32>
    %126 = arith.mulf %123, %125 : vector<32x128xf32>
    %127 = arith.addf %122, %126 : vector<32x128xf32>
    %128 = vector.extract_strided_slice %110 {offsets = [3, 0], sizes = [1, 128], strides = [1, 1]} : vector<7x128xf32> to vector<1x128xf32>
    %129 = vector.broadcast %128 : vector<1x128xf32> to vector<32x128xf32>
    %130 = arith.mulf %109, %129 : vector<32x128xf32>
    %131 = arith.addf %127, %130 : vector<32x128xf32>
    %c31_i32_39 = arith.constant 31 : i32
    %132 = tpu.dynamic_rotate %109 by %c31_i32_39 dim 0 : vector<32x128xf32>, i32 -> vector<32x128xf32>
    %133 = vector.extract_strided_slice %110 {offsets = [4, 0], sizes = [1, 128], strides = [1, 1]} : vector<7x128xf32> to vector<1x128xf32>
    %134 = vector.broadcast %133 : vector<1x128xf32> to vector<32x128xf32>
    %135 = arith.mulf %132, %134 : vector<32x128xf32>
    %136 = arith.addf %131, %135 : vector<32x128xf32>
    %c30_i32_40 = arith.constant 30 : i32
    %137 = tpu.dynamic_rotate %109 by %c30_i32_40 dim 0 : vector<32x128xf32>, i32 -> vector<32x128xf32>
    %138 = vector.extract_strided_slice %110 {offsets = [5, 0], sizes = [1, 128], strides = [1, 1]} : vector<7x128xf32> to vector<1x128xf32>
    %139 = vector.broadcast %138 : vector<1x128xf32> to vector<32x128xf32>
    %140 = arith.mulf %137, %139 : vector<32x128xf32>
    %141 = arith.addf %136, %140 : vector<32x128xf32>
    %c29_i32_41 = arith.constant 29 : i32
    %142 = tpu.dynamic_rotate %109 by %c29_i32_41 dim 0 : vector<32x128xf32>, i32 -> vector<32x128xf32>
    %143 = vector.extract_strided_slice %110 {offsets = [6, 0], sizes = [1, 128], strides = [1, 1]} : vector<7x128xf32> to vector<1x128xf32>
    %144 = vector.broadcast %143 : vector<1x128xf32> to vector<32x128xf32>
    %145 = arith.mulf %142, %144 : vector<32x128xf32>
    %146 = arith.addf %141, %145 : vector<32x128xf32>
    %147 = vector.broadcast %111 : vector<1x128xf32> to vector<32x128xf32>
    %148 = arith.addf %146, %147 : vector<32x128xf32>
    %149 = vector.extract_strided_slice %148 {offsets = [8, 0], sizes = [16, 128], strides = [1, 1]} : vector<32x128xf32> to vector<16x128xf32>
    %c0_42 = arith.constant 0 : index
    %c0_43 = arith.constant 0 : index
    %c0_44 = arith.constant 0 : index
    %150 = vector.load %arg11[%c0_42, %c0_43, %c0_44] : memref<1x16x128xf32, #tpu.memory_space<vmem>>, vector<1x16x128xf32>
    %151 = vector.shape_cast %150 : vector<1x16x128xf32> to vector<16x128xf32>
    %152 = vector.shape_cast %149 : vector<16x128xf32> to vector<1x16x128xf32>
    tpu.vector_store %arg11[%c0_42, %c0_43, %c0_44], %152 {strides = array<i32>} : memref<1x16x128xf32, #tpu.memory_space<vmem>>, vector<1x16x128xf32>,
    return
  }
  func.func @transform_0(%arg0: i32, %arg1: i32) -> (i32, i32, i32) {
    %c0_i32 = arith.constant 0 : i32
    %c0_i32_0 = arith.constant 0 : i32
    %c0_i32_1 = arith.constant 0 : i32
    return %arg0, %c0_i32, %c0_i32_0 : i32, i32, i32
  }
  func.func @transform_1(%arg0: i32, %arg1: i32) -> (i32, i32) {
    %c0_i32 = arith.constant 0 : i32
    %c0_i32_0 = arith.constant 0 : i32
    %c0_i32_1 = arith.constant 0 : i32
    return %c0_i32, %c0_i32_0 : i32, i32
  }
  func.func @transform_2(%arg0: i32, %arg1: i32) -> (i32, i32) {
    %c0_i32 = arith.constant 0 : i32
    %c0_i32_0 = arith.constant 0 : i32
    %c0_i32_1 = arith.constant 0 : i32
    return %c0_i32, %c0_i32_0 : i32, i32
  }
  func.func @transform_3(%arg0: i32, %arg1: i32) -> (i32, i32) {
    %c0_i32 = arith.constant 0 : i32
    %c0_i32_0 = arith.constant 0 : i32
    %c0_i32_1 = arith.constant 0 : i32
    return %c0_i32, %c0_i32_0 : i32, i32
  }
  func.func @transform_4(%arg0: i32, %arg1: i32) -> (i32, i32) {
    %c0_i32 = arith.constant 0 : i32
    %c0_i32_0 = arith.constant 0 : i32
    %c0_i32_1 = arith.constant 0 : i32
    return %c0_i32, %c0_i32_0 : i32, i32
  }
  func.func @transform_5(%arg0: i32, %arg1: i32) -> (i32, i32) {
    %c0_i32 = arith.constant 0 : i32
    %c0_i32_0 = arith.constant 0 : i32
    %c0_i32_1 = arith.constant 0 : i32
    return %c0_i32, %c0_i32_0 : i32, i32
  }
  func.func @transform_6(%arg0: i32, %arg1: i32) -> (i32, i32) {
    %c0_i32 = arith.constant 0 : i32
    %c0_i32_0 = arith.constant 0 : i32
    %c0_i32_1 = arith.constant 0 : i32
    return %c0_i32, %c0_i32_0 : i32, i32
  }
  func.func @transform_7(%arg0: i32, %arg1: i32) -> (i32, i32) {
    %c0_i32 = arith.constant 0 : i32
    %c0_i32_0 = arith.constant 0 : i32
    %c0_i32_1 = arith.constant 0 : i32
    return %c0_i32, %c0_i32_0 : i32, i32
  }
  func.func @transform_8(%arg0: i32, %arg1: i32) -> (i32, i32) {
    %c0_i32 = arith.constant 0 : i32
    %c0_i32_0 = arith.constant 0 : i32
    %c0_i32_1 = arith.constant 0 : i32
    return %c0_i32, %c0_i32_0 : i32, i32
  }
  func.func @transform_9(%arg0: i32, %arg1: i32) -> (i32, i32, i32) {
    %c0_i32 = arith.constant 0 : i32
    %c0_i32_0 = arith.constant 0 : i32
    return %arg0, %arg1, %c0_i32 : i32, i32, i32
  }
}

module attributes {stable_mosaic.version = 11 : i64} {
  func.func @star_block_kernel(%arg0: i32, %arg1: i32, %arg2: memref<1x80x128xf32, #tpu.memory_space<vmem>>, %arg3: memref<7x128xf32, #tpu.memory_space<vmem>>, %arg4: memref<1x128xf32, #tpu.memory_space<vmem>>, %arg5: memref<128x256xf32, #tpu.memory_space<vmem>>, %arg6: memref<1x256xf32, #tpu.memory_space<vmem>>, %arg7: memref<128x128xf32, #tpu.memory_space<vmem>>, %arg8: memref<1x128xf32, #tpu.memory_space<vmem>>, %arg9: memref<7x128xf32, #tpu.memory_space<vmem>>, %arg10: memref<1x128xf32, #tpu.memory_space<vmem>>, %arg11: memref<1x16x128xf32, #tpu.memory_space<vmem>>) attributes {dimension_semantics = [#tpu.dimension_semantics<parallel>, #tpu.dimension_semantics<parallel>], iteration_bounds = array<i64: 2, 4>, scalar_prefetch = 0 : i64, scratch_operands = 0 : i64, tpu.core_type = #tpu.core_type<tc>, window_params = [{transform_indices = @transform_0, window_bounds = array<i64: 1, 80, 128>}, {pipeline_mode = #tpu.pipeline_mode<synchronous>, transform_indices = @transform_1, window_bounds = array<i64: 7, 128>}, {pipeline_mode = #tpu.pipeline_mode<synchronous>, transform_indices = @transform_2, window_bounds = array<i64: 1, 128>}, {pipeline_mode = #tpu.pipeline_mode<synchronous>, transform_indices = @transform_3, window_bounds = array<i64: 128, 256>}, {pipeline_mode = #tpu.pipeline_mode<synchronous>, transform_indices = @transform_4, window_bounds = array<i64: 1, 256>}, {pipeline_mode = #tpu.pipeline_mode<synchronous>, transform_indices = @transform_5, window_bounds = array<i64: 128, 128>}, {pipeline_mode = #tpu.pipeline_mode<synchronous>, transform_indices = @transform_6, window_bounds = array<i64: 1, 128>}, {pipeline_mode = #tpu.pipeline_mode<synchronous>, transform_indices = @transform_7, window_bounds = array<i64: 7, 128>}, {pipeline_mode = #tpu.pipeline_mode<synchronous>, transform_indices = @transform_8, window_bounds = array<i64: 1, 128>}, {transform_indices = @transform_9, window_bounds = array<i64: 1, 16, 128>}]} {
    %c16_i32 = arith.constant 16 : i32
    %0 = arith.muli %arg1, %c16_i32 : i32
    %1 = tpu.assume_multiple %0, 16 : i32
    %c0 = arith.constant 0 : index
    %2 = arith.index_cast %1 : i32 to index
    %c0_0 = arith.constant 0 : index
    %3 = vector.load %arg2[%c0, %2, %c0_0] : memref<1x80x128xf32, #tpu.memory_space<vmem>>, vector<1x32x128xf32>
    %4 = vector.shape_cast %3 : vector<1x32x128xf32> to vector<32x128xf32>
    %c0_1 = arith.constant 0 : index
    %c0_2 = arith.constant 0 : index
    %5 = vector.load %arg3[%c0_1, %c0_2] : memref<7x128xf32, #tpu.memory_space<vmem>>, vector<7x128xf32>
    %c0_3 = arith.constant 0 : index
    %c0_4 = arith.constant 0 : index
    %6 = vector.load %arg4[%c0_3, %c0_4] : memref<1x128xf32, #tpu.memory_space<vmem>>, vector<1x128xf32>
    %cst = arith.constant 0.000000e+00 : f32
    %7 = vector.broadcast %cst : f32 to vector<32x128xf32>
    %c3_i32 = arith.constant 3 : i32
    %8 = tpu.dynamic_rotate %4 by %c3_i32 dim 0 : vector<32x128xf32>, i32 -> vector<32x128xf32>
    %9 = vector.extract_strided_slice %5 {offsets = [0, 0], sizes = [1, 128], strides = [1, 1]} : vector<7x128xf32> to vector<1x128xf32>
    %10 = vector.broadcast %9 : vector<1x128xf32> to vector<32x128xf32>
    %11 = arith.mulf %8, %10 : vector<32x128xf32>
    %12 = arith.addf %7, %11 : vector<32x128xf32>
    %c2_i32 = arith.constant 2 : i32
    %13 = tpu.dynamic_rotate %4 by %c2_i32 dim 0 : vector<32x128xf32>, i32 -> vector<32x128xf32>
    %14 = vector.extract_strided_slice %5 {offsets = [1, 0], sizes = [1, 128], strides = [1, 1]} : vector<7x128xf32> to vector<1x128xf32>
    %15 = vector.broadcast %14 : vector<1x128xf32> to vector<32x128xf32>
    %16 = arith.mulf %13, %15 : vector<32x128xf32>
    %17 = arith.addf %12, %16 : vector<32x128xf32>
    %c1_i32 = arith.constant 1 : i32
    %18 = tpu.dynamic_rotate %4 by %c1_i32 dim 0 : vector<32x128xf32>, i32 -> vector<32x128xf32>
    %19 = vector.extract_strided_slice %5 {offsets = [2, 0], sizes = [1, 128], strides = [1, 1]} : vector<7x128xf32> to vector<1x128xf32>
    %20 = vector.broadcast %19 : vector<1x128xf32> to vector<32x128xf32>
    %21 = arith.mulf %18, %20 : vector<32x128xf32>
    %22 = arith.addf %17, %21 : vector<32x128xf32>
    %23 = vector.extract_strided_slice %5 {offsets = [3, 0], sizes = [1, 128], strides = [1, 1]} : vector<7x128xf32> to vector<1x128xf32>
    %24 = vector.broadcast %23 : vector<1x128xf32> to vector<32x128xf32>
    %25 = arith.mulf %4, %24 : vector<32x128xf32>
    %26 = arith.addf %22, %25 : vector<32x128xf32>
    %c31_i32 = arith.constant 31 : i32
    %27 = tpu.dynamic_rotate %4 by %c31_i32 dim 0 : vector<32x128xf32>, i32 -> vector<32x128xf32>
    %28 = vector.extract_strided_slice %5 {offsets = [4, 0], sizes = [1, 128], strides = [1, 1]} : vector<7x128xf32> to vector<1x128xf32>
    %29 = vector.broadcast %28 : vector<1x128xf32> to vector<32x128xf32>
    %30 = arith.mulf %27, %29 : vector<32x128xf32>
    %31 = arith.addf %26, %30 : vector<32x128xf32>
    %c30_i32 = arith.constant 30 : i32
    %32 = tpu.dynamic_rotate %4 by %c30_i32 dim 0 : vector<32x128xf32>, i32 -> vector<32x128xf32>
    %33 = vector.extract_strided_slice %5 {offsets = [5, 0], sizes = [1, 128], strides = [1, 1]} : vector<7x128xf32> to vector<1x128xf32>
    %34 = vector.broadcast %33 : vector<1x128xf32> to vector<32x128xf32>
    %35 = arith.mulf %32, %34 : vector<32x128xf32>
    %36 = arith.addf %31, %35 : vector<32x128xf32>
    %c29_i32 = arith.constant 29 : i32
    %37 = tpu.dynamic_rotate %4 by %c29_i32 dim 0 : vector<32x128xf32>, i32 -> vector<32x128xf32>
    %38 = vector.extract_strided_slice %5 {offsets = [6, 0], sizes = [1, 128], strides = [1, 1]} : vector<7x128xf32> to vector<1x128xf32>
    %39 = vector.broadcast %38 : vector<1x128xf32> to vector<32x128xf32>
    %40 = arith.mulf %37, %39 : vector<32x128xf32>
    %41 = arith.addf %36, %40 : vector<32x128xf32>
    %42 = vector.broadcast %6 : vector<1x128xf32> to vector<32x128xf32>
    %43 = arith.addf %41, %42 : vector<32x128xf32>
    %c0_5 = arith.constant 0 : index
    %c0_6 = arith.constant 0 : index
    %44 = vector.load %arg5[%c0_5, %c0_6] : memref<128x256xf32, #tpu.memory_space<vmem>>, vector<128x256xf32>
    %cst_7 = arith.constant dense<0.000000e+00> : vector<32x256xf32>
    %45 = tpu.matmul %43, %44, %cst_7 {dimension_numbers = #tpu.dot_dimension_numbers<[1], [0], [0], [1], [0, 0, 1, 1], [], []>} : vector<32x128xf32>, vector<128x256xf32>, vector<32x256xf32> -> vector<32x256xf32>
    %c0_8 = arith.constant 0 : index
    %c0_9 = arith.constant 0 : index
    %46 = vector.load %arg6[%c0_8, %c0_9] : memref<1x256xf32, #tpu.memory_space<vmem>>, vector<1x256xf32>
    %47 = vector.broadcast %46 : vector<1x256xf32> to vector<32x256xf32>
    %48 = arith.addf %45, %47 : vector<32x256xf32>
    %49 = vector.extract_strided_slice %48 {offsets = [0, 0], sizes = [32, 128], strides = [1, 1]} : vector<32x256xf32> to vector<32x128xf32>
    %50 = vector.extract_strided_slice %48 {offsets = [0, 128], sizes = [32, 128], strides = [1, 1]} : vector<32x256xf32> to vector<32x128xf32>
    %cst_10 = arith.constant 5.000000e-01 : f32
    %51 = vector.broadcast %cst_10 : f32 to vector<32x128xf32>
    %52 = arith.mulf %51, %49 : vector<32x128xf32>
    %cst_11 = arith.constant 0.707106769 : f32
    %53 = vector.broadcast %cst_11 : f32 to vector<32x128xf32>
    %54 = arith.mulf %49, %53 : vector<32x128xf32>
    %cst_12 = arith.constant 0.000000e+00 : f32
    %55 = vector.broadcast %cst_12 : f32 to vector<32x128xf32>
    %56 = arith.cmpf oge, %54, %55 : vector<32x128xf32>
    %cst_13 = arith.constant 1.000000e+00 : f32
    %cst_14 = arith.constant -1.000000e+00 : f32
    %57 = vector.broadcast %cst_13 : f32 to vector<32x128xf32>
    %58 = vector.broadcast %cst_14 : f32 to vector<32x128xf32>
    %59 = arith.select %56, %57, %58 : vector<32x128xi1>, vector<32x128xf32>
    %60 = math.absf %54 : vector<32x128xf32>
    %cst_15 = arith.constant 0.327591091 : f32
    %61 = vector.broadcast %cst_15 : f32 to vector<32x128xf32>
    %62 = arith.mulf %61, %60 : vector<32x128xf32>
    %cst_16 = arith.constant 1.000000e+00 : f32
    %63 = vector.broadcast %cst_16 : f32 to vector<32x128xf32>
    %64 = arith.addf %63, %62 : vector<32x128xf32>
    %65 = tpu.reciprocal %64 : vector<32x128xf32> -> vector<32x128xf32>
    %cst_17 = arith.constant 1.06140542 : f32
    %66 = vector.broadcast %cst_17 : f32 to vector<32x128xf32>
    %67 = arith.mulf %65, %66 : vector<32x128xf32>
    %cst_18 = arith.constant -1.45315206 : f32
    %68 = vector.broadcast %cst_18 : f32 to vector<32x128xf32>
    %69 = arith.addf %68, %67 : vector<32x128xf32>
    %70 = arith.mulf %65, %69 : vector<32x128xf32>
    %cst_19 = arith.constant 1.42141378 : f32
    %71 = vector.broadcast %cst_19 : f32 to vector<32x128xf32>
    %72 = arith.addf %71, %70 : vector<32x128xf32>
    %73 = arith.mulf %65, %72 : vector<32x128xf32>
    %cst_20 = arith.constant -0.284496725 : f32
    %74 = vector.broadcast %cst_20 : f32 to vector<32x128xf32>
    %75 = arith.addf %74, %73 : vector<32x128xf32>
    %76 = arith.mulf %65, %75 : vector<32x128xf32>
    %cst_21 = arith.constant 0.254829586 : f32
    %77 = vector.broadcast %cst_21 : f32 to vector<32x128xf32>
    %78 = arith.addf %77, %76 : vector<32x128xf32>
    %79 = arith.mulf %65, %78 : vector<32x128xf32>
    %cst_22 = arith.constant 0.000000e+00 : f32
    %80 = vector.broadcast %cst_22 : f32 to vector<32x128xf32>
    %81 = arith.subf %80, %60 : vector<32x128xf32>
    %82 = arith.mulf %81, %60 : vector<32x128xf32>
    %83 = math.exp %82 : vector<32x128xf32>
    %84 = arith.mulf %79, %83 : vector<32x128xf32>
    %cst_23 = arith.constant 1.000000e+00 : f32
    %85 = vector.broadcast %cst_23 : f32 to vector<32x128xf32>
    %86 = arith.subf %85, %84 : vector<32x128xf32>
    %87 = arith.mulf %59, %86 : vector<32x128xf32>
    %cst_24 = arith.constant 1.000000e+00 : f32
    %88 = vector.broadcast %cst_24 : f32 to vector<32x128xf32>
    %89 = arith.addf %88, %87 : vector<32x128xf32>
    %90 = arith.mulf %52, %89 : vector<32x128xf32>
    %91 = arith.addf %90, %50 : vector<32x128xf32>
    %c0_25 = arith.constant 0 : index
    %c0_26 = arith.constant 0 : index
    %92 = vector.load %arg7[%c0_25, %c0_26] : memref<128x128xf32, #tpu.memory_space<vmem>>, vector<128x128xf32>
    %cst_27 = arith.constant dense<0.000000e+00> : vector<32x128xf32>
    %93 = tpu.matmul %91, %92, %cst_27 {dimension_numbers = #tpu.dot_dimension_numbers<[1], [0], [0], [1], [0, 0, 1, 1], [], []>} : vector<32x128xf32>, vector<128x128xf32>, vector<32x128xf32> -> vector<32x128xf32>
    %c0_28 = arith.constant 0 : index
    %c0_29 = arith.constant 0 : index
    %94 = vector.load %arg8[%c0_28, %c0_29] : memref<1x128xf32, #tpu.memory_space<vmem>>, vector<1x128xf32>
    %95 = vector.broadcast %94 : vector<1x128xf32> to vector<32x128xf32>
    %96 = arith.addf %93, %95 : vector<32x128xf32>
    %97 = tpu.iota {dimensions = array<i32: 0>} : vector<32x1xi32>
    %c8_i32 = arith.constant 8 : i32
    %98 = arith.subi %1, %c8_i32 : i32
    %99 = vector.broadcast %98 : i32 to vector<32x1xi32>
    %100 = arith.addi %97, %99 : vector<32x1xi32>
    %c0_i32 = arith.constant 0 : i32
    %101 = vector.broadcast %c0_i32 : i32 to vector<32x1xi32>
    %102 = arith.cmpi sge, %100, %101 : vector<32x1xi32>
    %c50_i32 = arith.constant 50 : i32
    %103 = vector.broadcast %c50_i32 : i32 to vector<32x1xi32>
    %104 = arith.cmpi slt, %100, %103 : vector<32x1xi32>
    %105 = arith.andi %102, %104 : vector<32x1xi1>
    %cst_30 = arith.constant 0.000000e+00 : f32
    %106 = vector.shape_cast %105 : vector<32x1xi1> to vector<32x1xi1>
    %107 = vector.broadcast %106 : vector<32x1xi1> to vector<32x128xi1>
    %108 = vector.broadcast %cst_30 : f32 to vector<32x128xf32>
    %109 = arith.select %107, %96, %108 : vector<32x128xi1>, vector<32x128xf32>
    %c0_31 = arith.constant 0 : index
    %c0_32 = arith.constant 0 : index
    %110 = vector.load %arg9[%c0_31, %c0_32] : memref<7x128xf32, #tpu.memory_space<vmem>>, vector<7x128xf32>
    %c0_33 = arith.constant 0 : index
    %c0_34 = arith.constant 0 : index
    %111 = vector.load %arg10[%c0_33, %c0_34] : memref<1x128xf32, #tpu.memory_space<vmem>>, vector<1x128xf32>
    %cst_35 = arith.constant 0.000000e+00 : f32
    %112 = vector.broadcast %cst_35 : f32 to vector<32x128xf32>
    %c3_i32_36 = arith.constant 3 : i32
    %113 = tpu.dynamic_rotate %109 by %c3_i32_36 dim 0 : vector<32x128xf32>, i32 -> vector<32x128xf32>
    %114 = vector.extract_strided_slice %110 {offsets = [0, 0], sizes = [1, 128], strides = [1, 1]} : vector<7x128xf32> to vector<1x128xf32>
    %115 = vector.broadcast %114 : vector<1x128xf32> to vector<32x128xf32>
    %116 = arith.mulf %113, %115 : vector<32x128xf32>
    %117 = arith.addf %112, %116 : vector<32x128xf32>
    %c2_i32_37 = arith.constant 2 : i32
    %118 = tpu.dynamic_rotate %109 by %c2_i32_37 dim 0 : vector<32x128xf32>, i32 -> vector<32x128xf32>
    %119 = vector.extract_strided_slice %110 {offsets = [1, 0], sizes = [1, 128], strides = [1, 1]} : vector<7x128xf32> to vector<1x128xf32>
    %120 = vector.broadcast %119 : vector<1x128xf32> to vector<32x128xf32>
    %121 = arith.mulf %118, %120 : vector<32x128xf32>
    %122 = arith.addf %117, %121 : vector<32x128xf32>
    %c1_i32_38 = arith.constant 1 : i32
    %123 = tpu.dynamic_rotate %109 by %c1_i32_38 dim 0 : vector<32x128xf32>, i32 -> vector<32x128xf32>
    %124 = vector.extract_strided_slice %110 {offsets = [2, 0], sizes = [1, 128], strides = [1, 1]} : vector<7x128xf32> to vector<1x128xf32>
    %125 = vector.broadcast %124 : vector<1x128xf32> to vector<32x128xf32>
    %126 = arith.mulf %123, %125 : vector<32x128xf32>
    %127 = arith.addf %122, %126 : vector<32x128xf32>
    %128 = vector.extract_strided_slice %110 {offsets = [3, 0], sizes = [1, 128], strides = [1, 1]} : vector<7x128xf32> to vector<1x128xf32>
    %129 = vector.broadcast %128 : vector<1x128xf32> to vector<32x128xf32>
    %130 = arith.mulf %109, %129 : vector<32x128xf32>
    %131 = arith.addf %127, %130 : vector<32x128xf32>
    %c31_i32_39 = arith.constant 31 : i32
    %132 = tpu.dynamic_rotate %109 by %c31_i32_39 dim 0 : vector<32x128xf32>, i32 -> vector<32x128xf32>
    %133 = vector.extract_strided_slice %110 {offsets = [4, 0], sizes = [1, 128], strides = [1, 1]} : vector<7x128xf32> to vector<1x128xf32>
    %134 = vector.broadcast %133 : vector<1x128xf32> to vector<32x128xf32>
    %135 = arith.mulf %132, %134 : vector<32x128xf32>
    %136 = arith.addf %131, %135 : vector<32x128xf32>
    %c30_i32_40 = arith.constant 30 : i32
    %137 = tpu.dynamic_rotate %109 by %c30_i32_40 dim 0 : vector<32x128xf32>, i32 -> vector<32x128xf32>
    %138 = vector.extract_strided_slice %110 {offsets = [5, 0], sizes = [1, 128], strides = [1, 1]} : vector<7x128xf32> to vector<1x128xf32>
    %139 = vector.broadcast %138 : vector<1x128xf32> to vector<32x128xf32>
    %140 = arith.mulf %137, %139 : vector<32x128xf32>
    %141 = arith.addf %136, %140 : vector<32x128xf32>
    %c29_i32_41 = arith.constant 29 : i32
    %142 = tpu.dynamic_rotate %109 by %c29_i32_41 dim 0 : vector<32x128xf32>, i32 -> vector<32x128xf32>
    %143 = vector.extract_strided_slice %110 {offsets = [6, 0], sizes = [1, 128], strides = [1, 1]} : vector<7x128xf32> to vector<1x128xf32>
    %144 = vector.broadcast %143 : vector<1x128xf32> to vector<32x128xf32>
    %145 = arith.mulf %142, %144 : vector<32x128xf32>
    %146 = arith.addf %141, %145 : vector<32x128xf32>
    %147 = vector.broadcast %111 : vector<1x128xf32> to vector<32x128xf32>
    %148 = arith.addf %146, %147 : vector<32x128xf32>
    %149 = vector.extract_strided_slice %148 {offsets = [8, 0], sizes = [16, 128], strides = [1, 1]} : vector<32x128xf32> to vector<16x128xf32>
    %c0_42 = arith.constant 0 : index
    %c0_43 = arith.constant 0 : index
    %c0_44 = arith.constant 0 : index
    %150 = vector.load %arg11[%c0_42, %c0_43, %c0_44] : memref<1x16x128xf32, #tpu.memory_space<vmem>>, vector<1x16x128xf32>
    %151 = vector.shape_cast %150 : vector<1x16x128xf32> to vector<16x128xf32>
    %152 = vector.shape_cast %149 : vector<16x128xf32> to vector<1x16x128xf32>
    tpu.vector_store %arg11[%c0_42, %c0_43, %c0_44], %152 {strides = array<i32>} : memref<1x16x128xf32, #tpu.memory_space<vmem>>, vector<1x16x128xf32>,
    return
  }
  func.func @transform_0(%arg0: i32, %arg1: i32) -> (i32, i32, i32) {
    %c0_i32 = arith.constant 0 : i32
    %c0_i32_0 = arith.constant 0 : i32
    %c0_i32_1 = arith.constant 0 : i32
    return %arg0, %c0_i32, %c0_i32_0 : i32, i32, i32
  }
  func.func @transform_1(%arg0: i32, %arg1: i32) -> (i32, i32) {
    %c0_i32 = arith.constant 0 : i32
    %c0_i32_0 = arith.constant 0 : i32
    %c0_i32_1 = arith.constant 0 : i32
    return %c0_i32, %c0_i32_0 : i32, i32
  }
  func.func @transform_2(%arg0: i32, %arg1: i32) -> (i32, i32) {
    %c0_i32 = arith.constant 0 : i32
    %c0_i32_0 = arith.constant 0 : i32
    %c0_i32_1 = arith.constant 0 : i32
    return %c0_i32, %c0_i32_0 : i32, i32
  }
  func.func @transform_3(%arg0: i32, %arg1: i32) -> (i32, i32) {
    %c0_i32 = arith.constant 0 : i32
    %c0_i32_0 = arith.constant 0 : i32
    %c0_i32_1 = arith.constant 0 : i32
    return %c0_i32, %c0_i32_0 : i32, i32
  }
  func.func @transform_4(%arg0: i32, %arg1: i32) -> (i32, i32) {
    %c0_i32 = arith.constant 0 : i32
    %c0_i32_0 = arith.constant 0 : i32
    %c0_i32_1 = arith.constant 0 : i32
    return %c0_i32, %c0_i32_0 : i32, i32
  }
  func.func @transform_5(%arg0: i32, %arg1: i32) -> (i32, i32) {
    %c0_i32 = arith.constant 0 : i32
    %c0_i32_0 = arith.constant 0 : i32
    %c0_i32_1 = arith.constant 0 : i32
    return %c0_i32, %c0_i32_0 : i32, i32
  }
  func.func @transform_6(%arg0: i32, %arg1: i32) -> (i32, i32) {
    %c0_i32 = arith.constant 0 : i32
    %c0_i32_0 = arith.constant 0 : i32
    %c0_i32_1 = arith.constant 0 : i32
    return %c0_i32, %c0_i32_0 : i32, i32
  }
  func.func @transform_7(%arg0: i32, %arg1: i32) -> (i32, i32) {
    %c0_i32 = arith.constant 0 : i32
    %c0_i32_0 = arith.constant 0 : i32
    %c0_i32_1 = arith.constant 0 : i32
    return %c0_i32, %c0_i32_0 : i32, i32
  }
  func.func @transform_8(%arg0: i32, %arg1: i32) -> (i32, i32) {
    %c0_i32 = arith.constant 0 : i32
    %c0_i32_0 = arith.constant 0 : i32
    %c0_i32_1 = arith.constant 0 : i32
    return %c0_i32, %c0_i32_0 : i32, i32
  }
  func.func @transform_9(%arg0: i32, %arg1: i32) -> (i32, i32, i32) {
    %c0_i32 = arith.constant 0 : i32
    %c0_i32_0 = arith.constant 0 : i32
    return %arg0, %arg1, %c0_i32 : i32, i32, i32
  }
}

</mosaic_0001>

<llo_original>
// kernel: tpu_custom_call.1
$region0: #{tpu_custom_call.1}
  #allocation0 [shape = 'u32[]', space=smem, size = 0x4, offset = 0x4, fixed_abs, tag = 'smem constant byte address 0x4 - core index']
  #allocation1 [shape = 'u32[144,128]{1,0:T(1,128)}', space=vmem, size = 0x12000, scoped, tag = 'internal scratch']
  %s0 = inlined_call_operand.hbm [shape: f32[2,80,128], index: 0, kind: input, shape index: {}]
  %s1 = inlined_call_operand.hbm [shape: f32[7,128], index: 1, kind: input, shape index: {}]
  %s2 = inlined_call_operand.vmem [shape: f32[1,128], index: 2, kind: input, shape index: {}]
  %s3 = inlined_call_operand.hbm [shape: f32[128,256], index: 3, kind: input, shape index: {}]
  %s4 = inlined_call_operand.vmem [shape: f32[1,256], index: 4, kind: input, shape index: {}]
  %s5 = inlined_call_operand.hbm [shape: f32[128,128], index: 5, kind: input, shape index: {}]
  %s6 = inlined_call_operand.vmem [shape: f32[1,128], index: 6, kind: input, shape index: {}]
  %s7 = inlined_call_operand.vmem [shape: f32[7,128], index: 7, kind: input, shape index: {}]
  %s8 = inlined_call_operand.vmem [shape: f32[1,128], index: 8, kind: input, shape index: {}]
  %s9 = inlined_call_operand.hbm [shape: f32[2,64,128], index: 9, kind: output, shape index: {}]
  %s10 = sld [smem:[#allocation0]]
  $region85: #{tpu_custom_call.1} parent=0
    _
  %s12 = ssub.s32 1, %s10
  %s13 = scalar_select 0, %s12, %s10
  $region1: #{tpu_custom_call.1} parent=0
    #allocation2 [shape = 'u8[81920]{0}', space=vmem, size = 0x14000, scoped, tag = 'input window, operand 0']
    #allocation3 [shape = 's32[2]{0}', space=sflag, size = 0x8, scoped, tag = 'scoped memory for tpu_custom_call.1']
    #allocation4 [shape = 's32[2]{0}', space=sflag, size = 0x8, scoped, tag = 'scoped memory for tpu_custom_call.1']
    #allocation5 [shape = 'u8[4096]{0}', space=vmem, size = 0x1000, scoped, tag = 'input window, operand 1, single buffered']
    #allocation6 [shape = 's32[1]{0}', space=sflag, size = 0x4, scoped, tag = 'scoped memory for tpu_custom_call.1']
    #allocation7 [shape = 'u8[131072]{0}', space=vmem, size = 0x20000, scoped, tag = 'input window, operand 3, single buffered']
    #allocation8 [shape = 'u8[65536]{0}', space=vmem, size = 0x10000, scoped, tag = 'input window, operand 5, single buffered']
    #allocation9 [shape = 's32[1]{0}', space=sflag, size = 0x4, scoped, tag = 'scoped memory for tpu_custom_call.1']
    #allocation10 [shape = 'u8[16384]{0}', space=vmem, size = 0x4000, scoped, tag = 'output window, operand 0']
    %14 = vsyncpa [#allocation3], 0
    %s15 = scalar_lea.sflag [#allocation3], 1
    %16 = vsyncpa %s15, 0
    %17 = vsyncpa [#allocation6], 0
    %18 = vsyncpa [#allocation9], 0
    %19 = vsyncpa [#allocation4], 0
    %s20 = scalar_lea.sflag [#allocation4], 1
    %21 = vsyncpa %s20, 0
    loop: start=0, step=1, limit=10
    $region2: #{tpu_custom_call.1} parent=1 // loop_pre_header
      _
    $region3: #{tpu_custom_call.1} parent=1 // loop_header
      %s23 = sphi 0, %s27
      %p24 = scmp.ge.s32.totalorder %s23, 10
      %s30 = sphi 0, %s42
      %s31 = sphi 0, %s38
      %s32 = sphi 0, %s30
      %s33 = sphi 0, %s31
      %s34 = sphi 0, %s32
      %s35 = sphi 0, %s33
      %s45 = sphi 0, %s47
      %s48 = sphi 0, %s45
      %s49 = sphi 0, %s48
      %s65 = sphi 0, %s49
      %s69 = sphi 0, %s69
      %s71 = sphi 0, %s69
      %s72 = sphi 0, %s71
      %s86 = sphi 0, %s72
      %s90 = sphi 0, %s90
      %s92 = sphi 0, %s90
      %s93 = sphi 0, %s92
      %s107 = sphi 0, %s93
      %s111 = sphi 0, %s111
      %s113 = sphi 0, %s111
      %s114 = sphi 0, %s113
      %s128 = sphi 0, %s114
      %s132 = sphi 0, %s132
      %s134 = sphi 0, %s132
      %s135 = sphi 0, %s134
      %s149 = sphi 0, %s135
      %s153 = sphi 0, %s153
      %s155 = sphi 0, %s153
      %s156 = sphi 0, %s155
      %s170 = sphi 0, %s156
      %s174 = sphi 0, %s174
      %s176 = sphi 0, %s174
      %s177 = sphi 0, %s176
      %s191 = sphi 0, %s177
      %s195 = sphi 0, %s195
      %s197 = sphi 0, %s195
      %s198 = sphi 0, %s197
      %s212 = sphi 0, %s198
      %s216 = sphi 0, %s216
      %s218 = sphi 0, %s216
      %s219 = sphi 0, %s218
      %s233 = sphi 0, %s219
      %s241 = sphi 0, %s243
      %s244 = sphi 0, %s241
      %s245 = sphi 0, %s244
      %s261 = sphi 0, %s245
    $region4: #{tpu_custom_call.1} parent=1 // loop_header_branch
      %26 = sbr.rel (%p24) target = $region8
    $region5: #{tpu_custom_call.1} parent=1 // loop_body
      %s28 = ssub.s32 %s23, 1
      %s29 = ssub.s32 %s23, 2
      %s36 = sadd.s32 1, %s31
      %p37 = scmp.ge.s32.totalorder %s36, 4
      %s38 = scalar_select %p37, 0, %s36
      %s39 = sadd.s32 1, %s30
      %s40 = scalar_select %p37, %s39, %s30
      %p41 = scmp.ge.s32.totalorder %s40, 2
      %s42 = scalar_select %p41, 0, %s40
      %s43 = ssub.s32 %s30, %s42
      %p44 = scmp.eq.s32.totalorder %s43, 0
      %s46 = sadd.s32 %s45, 1
      %s47 = scalar_select %p44, %s45, %s46
      %p50 = pneg %p44
      %p51 = scmp.eq.s32.totalorder %s23, 7
      %p52 = por %p50, %p51
      %p53 = scmp.ne.s32.totalorder %s45, %s48
      %p54 = scmp.eq.s32.totalorder %s23, 0
      %p55 = por %p53, %p54
      %p56 = scmp.ne.s32.totalorder %s45, %s48
      %p57 = scmp.eq.s32.totalorder %s28, 7
      %p58 = por %p56, %p57
      %p59 = scmp.ne.s32.totalorder %s48, %s49
      %p60 = scmp.eq.s32.totalorder %s28, 0
      %p61 = por %p59, %p60
      %p62 = scmp.ne.s32.totalorder %s48, %s49
      %p63 = scmp.eq.s32.totalorder %s29, 7
      %p64 = por %p62, %p63
      %p66 = scmp.ne.s32.totalorder %s49, %s65
      %p67 = scmp.eq.s32.totalorder %s29, 0
      %p68 = por %p66, %p67
      %s70 = sadd.s32 %s69, 1
      %p73 = scmp.eq.s32.totalorder %s23, 7
      %p74 = scmp.ne.s32.totalorder %s69, %s71
      %p75 = scmp.eq.s32.totalorder %s23, 0
      %p76 = por %p74, %p75
      %p77 = scmp.ne.s32.totalorder %s69, %s71
      %p78 = scmp.eq.s32.totalorder %s28, 7
      %p79 = por %p77, %p78
      %p80 = scmp.ne.s32.totalorder %s71, %s72
      %p81 = scmp.eq.s32.totalorder %s28, 0
      %p82 = por %p80, %p81
      %p83 = scmp.ne.s32.totalorder %s71, %s72
      %p84 = scmp.eq.s32.totalorder %s29, 7
      %p85 = por %p83, %p84
      %p87 = scmp.ne.s32.totalorder %s72, %s86
      %p88 = scmp.eq.s32.totalorder %s29, 0
      %p89 = por %p87, %p88
      %s91 = sadd.s32 %s90, 1
      %p94 = scmp.eq.s32.totalorder %s23, 7
      %p95 = scmp.ne.s32.totalorder %s90, %s92
      %p96 = scmp.eq.s32.totalorder %s23, 0
      %p97 = por %p95, %p96
      %p98 = scmp.ne.s32.totalorder %s90, %s92
      %p99 = scmp.eq.s32.totalorder %s28, 7
      %p100 = por %p98, %p99
      %p101 = scmp.ne.s32.totalorder %s92, %s93
      %p102 = scmp.eq.s32.totalorder %s28, 0
      %p103 = por %p101, %p102
      %p104 = scmp.ne.s32.totalorder %s92, %s93
      %p105 = scmp.eq.s32.totalorder %s29, 7
      %p106 = por %p104, %p105
      %p108 = scmp.ne.s32.totalorder %s93, %s107
      %p109 = scmp.eq.s32.totalorder %s29, 0
      %p110 = por %p108, %p109
      %s112 = sadd.s32 %s111, 1
      %p115 = scmp.eq.s32.totalorder %s23, 7
      %p116 = scmp.ne.s32.totalorder %s111, %s113
      %p117 = scmp.eq.s32.totalorder %s23, 0
      %p118 = por %p116, %p117
      %p119 = scmp.ne.s32.totalorder %s111, %s113
      %p120 = scmp.eq.s32.totalorder %s28, 7
      %p121 = por %p119, %p120
      %p122 = scmp.ne.s32.totalorder %s113, %s114
      %p123 = scmp.eq.s32.totalorder %s28, 0
      %p124 = por %p122, %p123
      %p125 = scmp.ne.s32.totalorder %s113, %s114
      %p126 = scmp.eq.s32.totalorder %s29, 7
      %p127 = por %p125, %p126
      %p129 = scmp.ne.s32.totalorder %s114, %s128
      %p130 = scmp.eq.s32.totalorder %s29, 0
      %p131 = por %p129, %p130
      %s133 = sadd.s32 %s132, 1
      %p136 = scmp.eq.s32.totalorder %s23, 7
      %p137 = scmp.ne.s32.totalorder %s132, %s134
      %p138 = scmp.eq.s32.totalorder %s23, 0
      %p139 = por %p137, %p138
      %p140 = scmp.ne.s32.totalorder %s132, %s134
      %p141 = scmp.eq.s32.totalorder %s28, 7
      %p142 = por %p140, %p141
      %p143 = scmp.ne.s32.totalorder %s134, %s135
      %p144 = scmp.eq.s32.totalorder %s28, 0
      %p145 = por %p143, %p144
      %p146 = scmp.ne.s32.totalorder %s134, %s135
      %p147 = scmp.eq.s32.totalorder %s29, 7
      %p148 = por %p146, %p147
      %p150 = scmp.ne.s32.totalorder %s135, %s149
      %p151 = scmp.eq.s32.totalorder %s29, 0
      %p152 = por %p150, %p151
      %s154 = sadd.s32 %s153, 1
      %p157 = scmp.eq.s32.totalorder %s23, 7
      %p158 = scmp.ne.s32.totalorder %s153, %s155
      %p159 = scmp.eq.s32.totalorder %s23, 0
      %p160 = por %p158, %p159
      %p161 = scmp.ne.s32.totalorder %s153, %s155
      %p162 = scmp.eq.s32.totalorder %s28, 7
      %p163 = por %p161, %p162
      %p164 = scmp.ne.s32.totalorder %s155, %s156
      %p165 = scmp.eq.s32.totalorder %s28, 0
      %p166 = por %p164, %p165
      %p167 = scmp.ne.s32.totalorder %s155, %s156
      %p168 = scmp.eq.s32.totalorder %s29, 7
      %p169 = por %p167, %p168
      %p171 = scmp.ne.s32.totalorder %s156, %s170
      %p172 = scmp.eq.s32.totalorder %s29, 0
      %p173 = por %p171, %p172
      %s175 = sadd.s32 %s174, 1
      %p178 = scmp.eq.s32.totalorder %s23, 7
      %p179 = scmp.ne.s32.totalorder %s174, %s176
      %p180 = scmp.eq.s32.totalorder %s23, 0
      %p181 = por %p179, %p180
      %p182 = scmp.ne.s32.totalorder %s174, %s176
      %p183 = scmp.eq.s32.totalorder %s28, 7
      %p184 = por %p182, %p183
      %p185 = scmp.ne.s32.totalorder %s176, %s177
      %p186 = scmp.eq.s32.totalorder %s28, 0
      %p187 = por %p185, %p186
      %p188 = scmp.ne.s32.totalorder %s176, %s177
      %p189 = scmp.eq.s32.totalorder %s29, 7
      %p190 = por %p188, %p189
      %p192 = scmp.ne.s32.totalorder %s177, %s191
      %p193 = scmp.eq.s32.totalorder %s29, 0
      %p194 = por %p192, %p193
      %s196 = sadd.s32 %s195, 1
      %p199 = scmp.eq.s32.totalorder %s23, 7
      %p200 = scmp.ne.s32.totalorder %s195, %s197
      %p201 = scmp.eq.s32.totalorder %s23, 0
      %p202 = por %p200, %p201
      %p203 = scmp.ne.s32.totalorder %s195, %s197
      %p204 = scmp.eq.s32.totalorder %s28, 7
      %p205 = por %p203, %p204
      %p206 = scmp.ne.s32.totalorder %s197, %s198
      %p207 = scmp.eq.s32.totalorder %s28, 0
      %p208 = por %p206, %p207
      %p209 = scmp.ne.s32.totalorder %s197, %s198
      %p210 = scmp.eq.s32.totalorder %s29, 7
      %p211 = por %p209, %p210
      %p213 = scmp.ne.s32.totalorder %s198, %s212
      %p214 = scmp.eq.s32.totalorder %s29, 0
      %p215 = por %p213, %p214
      %s217 = sadd.s32 %s216, 1
      %p220 = scmp.eq.s32.totalorder %s23, 7
      %p221 = scmp.ne.s32.totalorder %s216, %s218
      %p222 = scmp.eq.s32.totalorder %s23, 0
      %p223 = por %p221, %p222
      %p224 = scmp.ne.s32.totalorder %s216, %s218
      %p225 = scmp.eq.s32.totalorder %s28, 7
      %p226 = por %p224, %p225
      %p227 = scmp.ne.s32.totalorder %s218, %s219
      %p228 = scmp.eq.s32.totalorder %s28, 0
      %p229 = por %p227, %p228
      %p230 = scmp.ne.s32.totalorder %s218, %s219
      %p231 = scmp.eq.s32.totalorder %s29, 7
      %p232 = por %p230, %p231
      %p234 = scmp.ne.s32.totalorder %s219, %s233
      %p235 = scmp.eq.s32.totalorder %s29, 0
      %p236 = por %p234, %p235
      %s237 = ssub.s32 %s30, %s42
      %s238 = ssub.s32 %s31, %s38
      %s239 = sor.u32 %s237, %s238
      %p240 = scmp.eq.s32.totalorder %s239, 0
      %s242 = sadd.s32 %s241, 1
      %s243 = scalar_select %p240, %s241, %s242
      %p246 = pneg %p240
      %p247 = scmp.eq.s32.totalorder %s23, 7
      %p248 = por %p246, %p247
      %p249 = scmp.ne.s32.totalorder %s241, %s244
      %p250 = scmp.eq.s32.totalorder %s23, 0
      %p251 = por %p249, %p250
      %p252 = scmp.ne.s32.totalorder %s241, %s244
      %p253 = scmp.eq.s32.totalorder %s28, 7
      %p254 = por %p252, %p253
      %p255 = scmp.ne.s32.totalorder %s244, %s245
      %p256 = scmp.eq.s32.totalorder %s28, 0
      %p257 = por %p255, %p256
      %p258 = scmp.ne.s32.totalorder %s244, %s245
      %p259 = scmp.eq.s32.totalorder %s29, 7
      %p260 = por %p258, %p259
      %p262 = scmp.ne.s32.totalorder %s245, %s261
      %p263 = scmp.eq.s32.totalorder %s29, 0
      %p264 = por %p262, %p263
      %p265 = scmp.le.s32.totalorder 1, %s23
      %p266 = scmp.lt.s32.totalorder %s23, 9
      %p267 = pnand %p265, %p266
      %p268 = pneg %p267
      // Predicated region
      $region9: #{tpu_custom_call.1} parent=5 // pred_check
        _
      $region10: #{tpu_custom_call.1} parent=5 // pred_check_branch
        %270 = sbr.rel (%p267) target = $region12
      $region11: #{tpu_custom_call.1} parent=5 // pred_region
        %s271 = ssub.s32 %s23, 1
        // Predicated region
        $region13: #{tpu_custom_call.1} parent=11 // pred_check
          %p272 = pneg %p82
        $region14: #{tpu_custom_call.1} parent=11 // pred_check_branch
          %274 = sbr.rel (%p272) target = $region16
        $region15: #{tpu_custom_call.1} parent=11 // pred_region
          %s276 = ssub.s32 128, 128
          %277 = vsyncadd [#allocation6], %s276
          %s279 = sshll.u32 [#allocation5], 4
          %s280 = int_to_ptr.vmem [resolvable:$true] %s279
          %282 = dma.hbm_to_vmem [thread:$0]  %s1, 128, %s280, [#allocation6]
        $region16: #{tpu_custom_call.1} parent=11 // pred_fallthru
          _
        // Predicated region
        $region17: #{tpu_custom_call.1} parent=11 // pred_check
          %p283 = pneg %p103
        $region18: #{tpu_custom_call.1} parent=11 // pred_check_branch
          %285 = sbr.rel (%p283) target = $region20
        $region19: #{tpu_custom_call.1} parent=11 // pred_region
          _
        $region20: #{tpu_custom_call.1} parent=11 // pred_fallthru
          _
        // Predicated region
        $region21: #{tpu_custom_call.1} parent=11 // pred_check
          %p286 = pneg %p124
        $region22: #{tpu_custom_call.1} parent=11 // pred_check_branch
          %288 = sbr.rel (%p286) target = $region24
        $region23: #{tpu_custom_call.1} parent=11 // pred_region
          %s290 = ssub.s32 4096, 4096
          %291 = vsyncadd [#allocation6], %s290
          %s292 = sshll.u32 [#allocation7], 4
          %s293 = int_to_ptr.vmem [resolvable:$true] %s292
          %298 = dma.hbm_to_vmem [thread:$0]  %s3, 4096, %s293, [#allocation6], 256, 256, 16
        $region24: #{tpu_custom_call.1} parent=11 // pred_fallthru
          _
        // Predicated region
        $region25: #{tpu_custom_call.1} parent=11 // pred_check
          %p299 = pneg %p145
        $region26: #{tpu_custom_call.1} parent=11 // pred_check_branch
          %301 = sbr.rel (%p299) target = $region28
        $region27: #{tpu_custom_call.1} parent=11 // pred_region
          _
        $region28: #{tpu_custom_call.1} parent=11 // pred_fallthru
          _
        // Predicated region
        $region29: #{tpu_custom_call.1} parent=11 // pred_check
          %p302 = pneg %p166
        $region30: #{tpu_custom_call.1} parent=11 // pred_check_branch
          %304 = sbr.rel (%p302) target = $region32
        $region31: #{tpu_custom_call.1} parent=11 // pred_region
          %s306 = ssub.s32 2048, 2048
          %307 = vsyncadd [#allocation9], %s306
          %s308 = sshll.u32 [#allocation8], 4
          %s309 = int_to_ptr.vmem [resolvable:$true] %s308
          %314 = dma.hbm_to_vmem [thread:$0]  %s5, 2048, %s309, [#allocation9], 128, 128, 8
        $region32: #{tpu_custom_call.1} parent=11 // pred_fallthru
          _
        // Predicated region
        $region33: #{tpu_custom_call.1} parent=11 // pred_check
          %p315 = pneg %p187
        $region34: #{tpu_custom_call.1} parent=11 // pred_check_branch
          %317 = sbr.rel (%p315) target = $region36
        $region35: #{tpu_custom_call.1} parent=11 // pred_region
          _
        $region36: #{tpu_custom_call.1} parent=11 // pred_fallthru
          _
        // Predicated region
        $region37: #{tpu_custom_call.1} parent=11 // pred_check
          %p318 = pneg %p208
        $region38: #{tpu_custom_call.1} parent=11 // pred_check_branch
          %320 = sbr.rel (%p318) target = $region40
        $region39: #{tpu_custom_call.1} parent=11 // pred_region
          _
        $region40: #{tpu_custom_call.1} parent=11 // pred_fallthru
          _
        // Predicated region
        $region41: #{tpu_custom_call.1} parent=11 // pred_check
          %p321 = pneg %p229
        $region42: #{tpu_custom_call.1} parent=11 // pred_check_branch
          %323 = sbr.rel (%p321) target = $region44
        $region43: #{tpu_custom_call.1} parent=11 // pred_region
          _
        $region44: #{tpu_custom_call.1} parent=11 // pred_fallthru
          _
      $region12: #{tpu_custom_call.1} parent=5 // pred_fallthru
        _
      %p324 = scmp.lt.s32.totalorder %s23, 8
      // Predicated region
      $region45: #{tpu_custom_call.1} parent=5 // pred_check
        %p325 = pneg %p324
      $region46: #{tpu_custom_call.1} parent=5 // pred_check_branch
        %327 = sbr.rel (%p325) target = $region48
      $region47: #{tpu_custom_call.1} parent=5 // pred_region
        // Predicated region
        $region49: #{tpu_custom_call.1} parent=47 // pred_check
          %p328 = pneg %p55
        $region50: #{tpu_custom_call.1} parent=47 // pred_check_branch
          %330 = sbr.rel (%p328) target = $region52
        $region51: #{tpu_custom_call.1} parent=47 // pred_region
          %s331 = sand.u32 %s45, 1
          %s332 = scalar_lea.sflag [#allocation3], %s331
          %s333 = sand.u32 %s45, 1
          %s334 = smul.addr %s333, 80
          %s335 = scalar_lea.vmem [#allocation2], %s334
          %s337 = ssub.s32 1280, 1280
          %338 = vsyncadd %s332, %s337
          %s339 = smul.addr %s30, 10
          %s340 = smul.addr %s339, 128
          %s341 = scalar_lea.hbm %s0, %s340
          %s342 = sshll.u32 %s335, 4
          %s343 = int_to_ptr.vmem [resolvable:$true] %s342
          %348 = dma.hbm_to_vmem [thread:$0]  %s341, 1280, %s343, %s332, 128, 128, 8
        $region52: #{tpu_custom_call.1} parent=47 // pred_fallthru
          _
      $region48: #{tpu_custom_call.1} parent=5 // pred_fallthru
        _
      %p349 = scmp.le.s32.totalorder 1, %s23
      %p350 = scmp.lt.s32.totalorder %s23, 9
      %p351 = pnand %p349, %p350
      %p352 = pneg %p351
      // Predicated region
      $region53: #{tpu_custom_call.1} parent=5 // pred_check
        _
      $region54: #{tpu_custom_call.1} parent=5 // pred_check_branch
        %354 = sbr.rel (%p351) target = $region56
      $region55: #{tpu_custom_call.1} parent=5 // pred_region
        %s355 = ssub.s32 %s23, 1
        %s356 = sand.u32 %s48, 1
        %s357 = scalar_lea.sflag [#allocation3], %s356
        %s358 = sand.u32 %s48, 1
        %s359 = smul.addr %s358, 80
        %s360 = scalar_lea.vmem [#allocation2], %s359
        // Predicated region
        $region57: #{tpu_custom_call.1} parent=55 // pred_check
          %p361 = pneg %p61
        $region58: #{tpu_custom_call.1} parent=55 // pred_check_branch
          %363 = sbr.rel (%p361) target = $region60
        $region59: #{tpu_custom_call.1} parent=55 // pred_region
          %364 = dma.done %s357, 1280
        $region60: #{tpu_custom_call.1} parent=55 // pred_fallthru
          _
        // Predicated region
        $region61: #{tpu_custom_call.1} parent=55 // pred_check
          %p365 = pneg %p82
        $region62: #{tpu_custom_call.1} parent=55 // pred_check_branch
          %367 = sbr.rel (%p365) target = $region64
        $region63: #{tpu_custom_call.1} parent=55 // pred_region
          %368 = dma.done [#allocation6], 128
        $region64: #{tpu_custom_call.1} parent=55 // pred_fallthru
          _
        // Predicated region
        $region65: #{tpu_custom_call.1} parent=55 // pred_check
          %p369 = pneg %p124
        $region66: #{tpu_custom_call.1} parent=55 // pred_check_branch
          %371 = sbr.rel (%p369) target = $region68
        $region67: #{tpu_custom_call.1} parent=55 // pred_region
          %372 = dma.done [#allocation6], 4096
        $region68: #{tpu_custom_call.1} parent=55 // pred_fallthru
          _
        // Predicated region
        $region69: #{tpu_custom_call.1} parent=55 // pred_check
          %p373 = pneg %p166
        $region70: #{tpu_custom_call.1} parent=55 // pred_check_branch
          %375 = sbr.rel (%p373) target = $region72
        $region71: #{tpu_custom_call.1} parent=55 // pred_region
          %376 = dma.done [#allocation9], 2048
        $region72: #{tpu_custom_call.1} parent=55 // pred_fallthru
          _
        %s377 = sand.u32 %s48, 1
        %s378 = scalar_lea.sflag [#allocation3], %s377
        %s379 = sand.u32 %s48, 1
        %s380 = smul.addr %s379, 80
        %s381 = scalar_lea.vmem [#allocation2], %s380
        %p382 = pneg %p61
        %p383 = pneg %p58
        %p384 = pneg %p82
        %p385 = pneg %p79
        %p386 = pneg %p103
        %p387 = pneg %p100
        %p388 = pneg %p124
        %p389 = pneg %p121
        %p390 = pneg %p145
        %p391 = pneg %p142
        %p392 = pneg %p166
        %p393 = pneg %p163
        %p394 = pneg %p187
        %p395 = pneg %p184
        %p396 = pneg %p208
        %p397 = pneg %p205
        %p398 = pneg %p229
        %p399 = pneg %p226
        %p400 = pneg %p257
        %p401 = pneg %p254
        %s402 = sand.u32 %s244, 1
        %s403 = scalar_lea.sflag [#allocation4], %s402
        %s404 = sand.u32 %s244, 1
        %s405 = smul.addr %s404, 16
        %s406 = scalar_lea.vmem [#allocation10], %s405
        %s407 = smul.u32 2, %s33
        %s408 = smul.u32 %s33, 16
        %s409 = scalar_lea.vmem %s360, %s408 [#allocation2]
        %v410 = vld [vmem:[%s409] sm:$0xff]
        %v411 = vld [vmem:[%s409 + $0x8] sm:$0xff]
        %v412 = vld [vmem:[%s409 + $0x10] sm:$0xff]
        %v413 = vld [vmem:[%s409 + $0x18] sm:$0xff]
        %v414 = vld [vmem:[#allocation5] sm:$0x7f]
        %v415 = vld [vmem:[%s2] sm:$0x1]
        %v416 = vrot.slane %v410, 5
        %v417 = vrot.slane %v411, 5
        %v418 = vrot.slane %v412, 5
        %v419 = vrot.slane %v413, 5
        %v420 = vlaneseq
        %v421 = vshrl.u32 %v420, 7
        %vm422 = vcmp.lt.s32.totalorder %v421, 3
        %v423 = vsel %vm422, %v418, %v419
        %v424 = vsel %vm422, %v417, %v418
        %v425 = vsel %vm422, %v416, %v417
        %v426 = vsel %vm422, %v419, %v416
        %v427 = vlaneseq
        %v428 = vshrl.u32 %v427, 7
        %v429 = vsub.s32 0, %v428
        %v430 = vrot.slane %v414, %v429
        %v431 = vmul.f32 %v426, %v430
        %v432 = vmul.f32 %v425, %v430
        %v433 = vmul.f32 %v424, %v430
        %v434 = vmul.f32 %v423, %v430
        %v435 = vadd.f32 %v431, 0.0
        %v436 = vadd.f32 %v432, 0.0
        %v437 = vadd.f32 %v433, 0.0
        %v438 = vadd.f32 %v434, 0.0
        %v439 = vrot.slane %v410, 6
        %v440 = vrot.slane %v411, 6
        %v441 = vrot.slane %v412, 6
        %v442 = vrot.slane %v413, 6
        %vm443 = vcmp.lt.s32.totalorder %v421, 2
        %v444 = vsel %vm443, %v441, %v442
        %v445 = vsel %vm443, %v440, %v441
        %v446 = vsel %vm443, %v439, %v440
        %v447 = vsel %vm443, %v442, %v439
        %v448 = vlaneseq
        %v449 = vshrl.u32 %v448, 7
        %v450 = vsub.s32 1, %v449
        %v451 = vrot.slane %v414, %v450
        %v452 = vmul.f32 %v447, %v451
        %v453 = vmul.f32 %v446, %v451
        %v454 = vmul.f32 %v445, %v451
        %v455 = vmul.f32 %v444, %v451
        %v456 = vadd.f32 %v435, %v452
        %v457 = vadd.f32 %v436, %v453
        %v458 = vadd.f32 %v437, %v454
        %v459 = vadd.f32 %v438, %v455
        %v460 = vrot.slane %v410, 7
        %v461 = vrot.slane %v411, 7
        %v462 = vrot.slane %v412, 7
        %v463 = vrot.slane %v413, 7
        %vm464 = vcmp.lt.s32.totalorder %v421, 1
        %v465 = vsel %vm464, %v462, %v463
        %v466 = vsel %vm464, %v461, %v462
        %v467 = vsel %vm464, %v460, %v461
        %v468 = vsel %vm464, %v463, %v460
        %v469 = vlaneseq
        %v470 = vshrl.u32 %v469, 7
        %v471 = vsub.s32 2, %v470
        %v472 = vrot.slane %v414, %v471
        %v473 = vmul.f32 %v468, %v472
        %v474 = vmul.f32 %v467, %v472
        %v475 = vmul.f32 %v466, %v472
        %v476 = vmul.f32 %v465, %v472
        %v477 = vadd.f32 %v456, %v473
        %v478 = vadd.f32 %v457, %v474
        %v479 = vadd.f32 %v458, %v475
        %v480 = vadd.f32 %v459, %v476
        %v481 = vlaneseq
        %v482 = vshrl.u32 %v481, 7
        %v483 = vsub.s32 3, %v482
        %v484 = vrot.slane %v414, %v483
        %v485 = vmul.f32 %v410, %v484
        %v486 = vmul.f32 %v411, %v484
        %v487 = vmul.f32 %v412, %v484
        %v488 = vmul.f32 %v413, %v484
        %v489 = vadd.f32 %v477, %v485
        %v490 = vadd.f32 %v478, %v486
        %v491 = vadd.f32 %v479, %v487
        %v492 = vadd.f32 %v480, %v488
        %v493 = vrot.slane %v410, 1
        %v494 = vrot.slane %v411, 1
        %v495 = vrot.slane %v412, 1
        %v496 = vrot.slane %v413, 1
        %vm497 = vcmp.lt.s32.totalorder %v421, 7
        %v498 = vsel %vm497, %v495, %v496
        %v499 = vsel %vm497, %v494, %v495
        %v500 = vsel %vm497, %v493, %v494
        %v501 = vsel %vm497, %v496, %v493
        %v502 = vlaneseq
        %v503 = vshrl.u32 %v502, 7
        %v504 = vsub.s32 4, %v503
        %v505 = vrot.slane %v414, %v504
        %v506 = vmul.f32 %v500, %v505
        %v507 = vmul.f32 %v499, %v505
        %v508 = vmul.f32 %v498, %v505
        %v509 = vmul.f32 %v501, %v505
        %v510 = vadd.f32 %v489, %v506
        %v511 = vadd.f32 %v490, %v507
        %v512 = vadd.f32 %v491, %v508
        %v513 = vadd.f32 %v492, %v509
        %v514 = vrot.slane %v410, 2
        %v515 = vrot.slane %v411, 2
        %v516 = vrot.slane %v412, 2
        %v517 = vrot.slane %v413, 2
        %vm518 = vcmp.lt.s32.totalorder %v421, 6
        %v519 = vsel %vm518, %v516, %v517
        %v520 = vsel %vm518, %v515, %v516
        %v521 = vsel %vm518, %v514, %v515
        %v522 = vsel %vm518, %v517, %v514
        %v523 = vlaneseq
        %v524 = vshrl.u32 %v523, 7
        %v525 = vsub.s32 5, %v524
        %v526 = vrot.slane %v414, %v525
        %v527 = vmul.f32 %v521, %v526
        %v528 = vmul.f32 %v520, %v526
        %v529 = vmul.f32 %v519, %v526
        %v530 = vmul.f32 %v522, %v526
        %v531 = vadd.f32 %v510, %v527
        %v532 = vadd.f32 %v511, %v528
        %v533 = vadd.f32 %v512, %v529
        %v534 = vadd.f32 %v513, %v530
        %v535 = vrot.slane %v410, 3
        %v536 = vrot.slane %v411, 3
        %v537 = vrot.slane %v412, 3
        %v538 = vrot.slane %v413, 3
        %vm539 = vcmp.lt.s32.totalorder %v421, 5
        %v540 = vsel %vm539, %v537, %v538
        %v541 = vsel %vm539, %v536, %v537
        %v542 = vsel %vm539, %v535, %v536
        %v543 = vsel %vm539, %v538, %v535
        %v544 = vlaneseq
        %v545 = vshrl.u32 %v544, 7
        %v546 = vsub.s32 6, %v545
        %v547 = vrot.slane %v414, %v546
        %v548 = vmul.f32 %v542, %v547
        %v549 = vmul.f32 %v541, %v547
        %v550 = vmul.f32 %v540, %v547
        %v551 = vmul.f32 %v543, %v547
        %v552 = vadd.f32 %v531, %v548
        %v553 = vadd.f32 %v532, %v549
        %v554 = vadd.f32 %v533, %v550
        %v555 = vadd.f32 %v534, %v551
        %v557 = vlaneseq
        %v558 = vshrl.u32 %v557, 7
        %v559 = vsub.s32 0, %v558
        %v560 = vrot.slane %v415, %v559
        %v562 = vadd.f32 %v552, %v560
        %v563 = vadd.f32 %v553, %v560
        %v564 = vadd.f32 %v554, %v560
        %v565 = vadd.f32 %v555, %v560
        %v566 = vld [vmem:[#allocation7] sm:$0xff]
        %v567 = vld [vmem:[#allocation7 + $0x8] sm:$0xff]
        %v568 = vld [vmem:[#allocation7 + $0x10] sm:$0xff]
        %v569 = vld [vmem:[#allocation7 + $0x18] sm:$0xff]
        %v570 = vld [vmem:[#allocation7 + $0x20] sm:$0xff]
        %v571 = vld [vmem:[#allocation7 + $0x28] sm:$0xff]
        %v572 = vld [vmem:[#allocation7 + $0x30] sm:$0xff]
        %v573 = vld [vmem:[#allocation7 + $0x38] sm:$0xff]
        %v574 = vld [vmem:[#allocation7 + $0x40] sm:$0xff]
        %v575 = vld [vmem:[#allocation7 + $0x48] sm:$0xff]
        %v576 = vld [vmem:[#allocation7 + $0x50] sm:$0xff]
        %v577 = vld [vmem:[#allocation7 + $0x58] sm:$0xff]
        %v578 = vld [vmem:[#allocation7 + $0x60] sm:$0xff]
        %v579 = vld [vmem:[#allocation7 + $0x68] sm:$0xff]
        %v580 = vld [vmem:[#allocation7 + $0x70] sm:$0xff]
        %v581 = vld [vmem:[#allocation7 + $0x78] sm:$0xff]
        %v582 = vld [vmem:[#allocation7 + $0x80] sm:$0xff]
        %v583 = vld [vmem:[#allocation7 + $0x88] sm:$0xff]
        %v584 = vld [vmem:[#allocation7 + $0x90] sm:$0xff]
        %v585 = vld [vmem:[#allocation7 + $0x98] sm:$0xff]
        %v586 = vld [vmem:[#allocation7 + $0xa0] sm:$0xff]
        %v587 = vld [vmem:[#allocation7 + $0xa8] sm:$0xff]
        %v588 = vld [vmem:[#allocation7 + $0xb0] sm:$0xff]
        %v589 = vld [vmem:[#allocation7 + $0xb8] sm:$0xff]
        %v590 = vld [vmem:[#allocation7 + $0xc0] sm:$0xff]
        %v591 = vld [vmem:[#allocation7 + $0xc8] sm:$0xff]
        %v592 = vld [vmem:[#allocation7 + $0xd0] sm:$0xff]
        %v593 = vld [vmem:[#allocation7 + $0xd8] sm:$0xff]
        %v594 = vld [vmem:[#allocation7 + $0xe0] sm:$0xff]
        %v595 = vld [vmem:[#allocation7 + $0xe8] sm:$0xff]
        %v596 = vld [vmem:[#allocation7 + $0xf0] sm:$0xff]
        %v597 = vld [vmem:[#allocation7 + $0xf8] sm:$0xff]
        %v598 = vld [vmem:[%s4] sm:$0x3]
        %v600 = vlaneseq
        %v601 = vshrl.u32 %v600, 7
        %v602 = vsub.s32 0, %v601
        %v603 = vrot.slane %v598, %v602
        %v604 = vlaneseq
        %v605 = vshrl.u32 %v604, 7
        %v606 = vsub.s32 1, %v605
        %v607 = vrot.slane %v598, %v606
        %610 = vmatprep.subr.mxu0 %v597
        %611 = vmatpush1.msra.mxu0 %v596
        %612 = vmatprep.subr.mxu0 %v595
        %613 = vmatpush1.msra.mxu0 %v594
        %614 = vmatprep.subr.mxu0 %v593
        %615 = vmatpush1.msra.mxu0 %v592
        %616 = vmatprep.subr.mxu0 %v591
        %617 = vmatpush1.msra.mxu0 %v590
        %618 = vmatprep.subr.mxu0 %v589
        %619 = vmatpush1.msra.mxu0 %v588
        %620 = vmatprep.subr.mxu0 %v587
        %621 = vmatpush1.msra.mxu0 %v586
        %622 = vmatprep.subr.mxu0 %v585
        %623 = vmatpush1.msra.mxu0 %v584
        %624 = vmatprep.subr.mxu0 %v583
        %625 = vmatpush1.msra.mxu0 %v582
        %626 = vmatprep.subr.mxu0 %v581
        %627 = vmatpush1.msra.mxu0 %v580
        %628 = vmatprep.subr.mxu0 %v579
        %629 = vmatpush1.msra.mxu0 %v578
        %630 = vmatprep.subr.mxu0 %v577
        %631 = vmatpush1.msra.mxu0 %v576
        %632 = vmatprep.subr.mxu0 %v575
        %633 = vmatpush1.msra.mxu0 %v574
        %634 = vmatprep.subr.mxu0 %v573
        %635 = vmatpush1.msra.mxu0 %v572
        %636 = vmatprep.subr.mxu0 %v571
        %637 = vmatpush1.msra.mxu0 %v570
        %638 = vmatprep.subr.mxu0 %v569
        %639 = vmatpush1.msra.mxu0 %v568
        %640 = vmatprep.subr.mxu0 %v567
        %641 = vmatpush1.msra.mxu0 %v566
        %642 = vmatprep.subr.mxu0 0.0
        %643 = vmatpush2.msra.mxu0 0.0
        %644 = vmatprep.subr.mxu0 0.0
        %645 = vmatpush2.msra.mxu0 0.0
        %646 = vmatprep.subr.mxu0 0.0
        %647 = vmatpush2.msra.mxu0 0.0
        %648 = vmatprep.subr.mxu0 0.0
        %649 = vmatpush2.msra.mxu0 0.0
        %650 = vmatprep.subr.mxu0 0.0
        %651 = vmatpush2.msra.mxu0 0.0
        %652 = vmatprep.subr.mxu0 0.0
        %653 = vmatpush2.msra.mxu0 0.0
        %654 = vmatprep.subr.mxu0 0.0
        %655 = vmatpush2.msra.mxu0 0.0
        %656 = vmatprep.subr.mxu0 0.0
        %657 = vmatpush2.msra.mxu0 0.0
        %658 = vmatprep.subr.mxu0 0.0
        %659 = vmatpush2.msra.mxu0 0.0
        %660 = vmatprep.subr.mxu0 0.0
        %661 = vmatpush2.msra.mxu0 0.0
        %662 = vmatprep.subr.mxu0 0.0
        %663 = vmatpush2.msra.mxu0 0.0
        %664 = vmatprep.subr.mxu0 0.0
        %665 = vmatpush2.msra.mxu0 0.0
        %666 = vmatprep.subr.mxu0 0.0
        %667 = vmatpush2.msra.mxu0 0.0
        %668 = vmatprep.subr.mxu0 0.0
        %669 = vmatpush2.msra.mxu0 0.0
        %670 = vmatprep.subr.mxu0 0.0
        %671 = vmatpush2.msra.mxu0 0.0
        %672 = vmatprep.subr.mxu0 0.0
        %673 = vmatpush2.msra.mxu0 0.0
        %674 = vmatprep.mubr.f32.mxu0 0.0
        %675 = vmatmul.mubr.f32.gmra.mxu0 %v562
        %v676 = vpop.f32.mrf.mxu0
        %v677 = vadd.f32 %v603, %v676
        %v678 = vpop.f32.mrf.mxu0
        %v679 = vadd.f32 %v607, %v678
        %680 = vmatprep.mubr.f32.mxu0 0.0
        %681 = vmatmul.mubr.f32.gmra.mxu0 %v563
        %v682 = vpop.f32.mrf.mxu0
        %v683 = vadd.f32 %v603, %v682
        %v684 = vpop.f32.mrf.mxu0
        %v685 = vadd.f32 %v607, %v684
        %686 = vmatprep.mubr.f32.mxu0 0.0
        %687 = vmatmul.mubr.f32.gmra.mxu0 %v564
        %v688 = vpop.f32.mrf.mxu0
        %v689 = vadd.f32 %v603, %v688
        %v690 = vpop.f32.mrf.mxu0
        %v691 = vadd.f32 %v607, %v690
        %692 = vmatprep.mubr.f32.mxu0 0.0
        %693 = vmatmul.mubr.f32.gmra.mxu0 %v565
        %v694 = vpop.f32.mrf.mxu0
        %v695 = vadd.f32 %v603, %v694
        %v696 = vpop.f32.mrf.mxu0
        %v697 = vadd.f32 %v607, %v696
        %698 = vdwg.mxu0
        %v699 = vmul.f32 %v677, 0.5
        %v700 = vmul.f32 %v683, 0.5
        %v701 = vmul.f32 %v689, 0.5
        %v702 = vmul.f32 %v695, 0.5
        %v703 = vmul.f32 %v677, 0.70710677
        %v704 = vmul.f32 %v683, 0.70710677
        %v705 = vmul.f32 %v689, 0.70710677
        %v706 = vmul.f32 %v695, 0.70710677
        %vm707 = vcmp.ge.f32.partialorder %v703, 0.0
        %vm708 = vcmp.ge.f32.partialorder %v704, 0.0
        %vm709 = vcmp.ge.f32.partialorder %v705, 0.0
        %vm710 = vcmp.ge.f32.partialorder %v706, 0.0
        %v711 = vsel %vm707, 1.0, -1.0
        %v712 = vsel %vm708, 1.0, -1.0
        %v713 = vsel %vm709, 1.0, -1.0
        %v714 = vsel %vm710, 1.0, -1.0
        %v715 = vand.u32 2147483647, %v703
        %v716 = vand.u32 2147483647, %v704
        %v717 = vand.u32 2147483647, %v705
        %v718 = vand.u32 2147483647, %v706
        %v719 = vmul.f32 %v715, 0.3275911
        %v720 = vmul.f32 %v716, 0.3275911
        %v721 = vmul.f32 %v717, 0.3275911
        %v722 = vmul.f32 %v718, 0.3275911
        %v723 = vadd.f32 %v719, 1.0
        %v724 = vadd.f32 %v720, 1.0
        %v725 = vadd.f32 %v721, 1.0
        %v726 = vadd.f32 %v722, 1.0
        %v727 = vrcp.pop %v723
        %v728 = vrcp.pop %v724
        %v729 = vrcp.pop %v725
        %v730 = vrcp.pop %v726
        %v731 = vmul.f32 %v727, 1.0614054
        %v732 = vmul.f32 %v728, 1.0614054
        %v733 = vmul.f32 %v729, 1.0614054
        %v734 = vmul.f32 %v730, 1.0614054
        %v735 = vadd.f32 %v731, -1.4531521
        %v736 = vadd.f32 %v732, -1.4531521
        %v737 = vadd.f32 %v733, -1.4531521
        %v738 = vadd.f32 %v734, -1.4531521
        %v739 = vmul.f32 %v727, %v735
        %v740 = vmul.f32 %v728, %v736
        %v741 = vmul.f32 %v729, %v737
        %v742 = vmul.f32 %v730, %v738
        %v743 = vadd.f32 %v739, 1.4214138
        %v744 = vadd.f32 %v740, 1.4214138
        %v745 = vadd.f32 %v741, 1.4214138
        %v746 = vadd.f32 %v742, 1.4214138
        %v747 = vmul.f32 %v727, %v743
        %v748 = vmul.f32 %v728, %v744
        %v749 = vmul.f32 %v729, %v745
        %v750 = vmul.f32 %v730, %v746
        %v751 = vadd.f32 %v747, -0.28449672
        %v752 = vadd.f32 %v748, -0.28449672
        %v753 = vadd.f32 %v749, -0.28449672
        %v754 = vadd.f32 %v750, -0.28449672
        %v755 = vmul.f32 %v727, %v751
        %v756 = vmul.f32 %v728, %v752
        %v757 = vmul.f32 %v729, %v753
        %v758 = vmul.f32 %v730, %v754
        %v759 = vadd.f32 %v755, 0.2548296
        %v760 = vadd.f32 %v756, 0.2548296
        %v761 = vadd.f32 %v757, 0.2548296
        %v762 = vadd.f32 %v758, 0.2548296
        %v763 = vmul.f32 %v727, %v759
        %v764 = vmul.f32 %v728, %v760
        %v765 = vmul.f32 %v729, %v761
        %v766 = vmul.f32 %v730, %v762
        %v767 = vsub.f32 0.0, %v715
        %v768 = vsub.f32 0.0, %v716
        %v769 = vsub.f32 0.0, %v717
        %v770 = vsub.f32 0.0, %v718
        %v771 = vmul.f32 %v767, %v715
        %v772 = vmul.f32 %v768, %v716
        %v773 = vmul.f32 %v769, %v717
        %v774 = vmul.f32 %v770, %v718
        %v775 = vmul.f32 %v771, 1.442695
        %v776 = vpow.pop %v775
        %v777 = vmul.f32 %v772, 1.442695
        %v778 = vpow.pop %v777
        %v779 = vmul.f32 %v773, 1.442695
        %v780 = vpow.pop %v779
        %v781 = vmul.f32 %v774, 1.442695
        %v782 = vpow.pop %v781
        %v783 = vmul.f32 %v763, %v776
        %v784 = vmul.f32 %v764, %v778
        %v785 = vmul.f32 %v765, %v780
        %v786 = vmul.f32 %v766, %v782
        %v787 = vsub.f32 1.0, %v783
        %v788 = vsub.f32 1.0, %v784
        %v789 = vsub.f32 1.0, %v785
        %v790 = vsub.f32 1.0, %v786
        %v791 = vmul.f32 %v711, %v787
        %v792 = vmul.f32 %v712, %v788
        %v793 = vmul.f32 %v713, %v789
        %v794 = vmul.f32 %v714, %v790
        %v795 = vadd.f32 %v791, 1.0
        %v796 = vadd.f32 %v792, 1.0
        %v797 = vadd.f32 %v793, 1.0
        %v798 = vadd.f32 %v794, 1.0
        %v799 = vmul.f32 %v699, %v795
        %v800 = vmul.f32 %v700, %v796
        %v801 = vmul.f32 %v701, %v797
        %v802 = vmul.f32 %v702, %v798
        %v803 = vadd.f32 %v799, %v679
        %v804 = vadd.f32 %v800, %v685
        %v805 = vadd.f32 %v801, %v691
        %v806 = vadd.f32 %v802, %v697
        %v807 = vld [vmem:[#allocation8] sm:$0xff]
        %v808 = vld [vmem:[#allocation8 + $0x8] sm:$0xff]
        %v809 = vld [vmem:[#allocation8 + $0x10] sm:$0xff]
        %v810 = vld [vmem:[#allocation8 + $0x18] sm:$0xff]
        %v811 = vld [vmem:[#allocation8 + $0x20] sm:$0xff]
        %v812 = vld [vmem:[#allocation8 + $0x28] sm:$0xff]
        %v813 = vld [vmem:[#allocation8 + $0x30] sm:$0xff]
        %v814 = vld [vmem:[#allocation8 + $0x38] sm:$0xff]
        %v815 = vld [vmem:[#allocation8 + $0x40] sm:$0xff]
        %v816 = vld [vmem:[#allocation8 + $0x48] sm:$0xff]
        %v817 = vld [vmem:[#allocation8 + $0x50] sm:$0xff]
        %v818 = vld [vmem:[#allocation8 + $0x58] sm:$0xff]
        %v819 = vld [vmem:[#allocation8 + $0x60] sm:$0xff]
        %v820 = vld [vmem:[#allocation8 + $0x68] sm:$0xff]
        %v821 = vld [vmem:[#allocation8 + $0x70] sm:$0xff]
        %v822 = vld [vmem:[#allocation8 + $0x78] sm:$0xff]
        %v823 = vld [vmem:[%s6] sm:$0x1]
        %v825 = vlaneseq
        %v826 = vshrl.u32 %v825, 7
        %v827 = vsub.s32 0, %v826
        %v828 = vrot.slane %v823, %v827
        %830 = vmatprep.subr.mxu0 0.0
        %831 = vmatpush1.msra.mxu0 %v822
        %832 = vmatprep.subr.mxu0 0.0
        %833 = vmatpush1.msra.mxu0 %v821
        %834 = vmatprep.subr.mxu0 0.0
        %835 = vmatpush1.msra.mxu0 %v820
        %836 = vmatprep.subr.mxu0 0.0
        %837 = vmatpush1.msra.mxu0 %v819
        %838 = vmatprep.subr.mxu0 0.0
        %839 = vmatpush1.msra.mxu0 %v818
        %840 = vmatprep.subr.mxu0 0.0
        %841 = vmatpush1.msra.mxu0 %v817
        %842 = vmatprep.subr.mxu0 0.0
        %843 = vmatpush1.msra.mxu0 %v816
        %844 = vmatprep.subr.mxu0 0.0
        %845 = vmatpush1.msra.mxu0 %v815
        %846 = vmatprep.subr.mxu0 0.0
        %847 = vmatpush1.msra.mxu0 %v814
        %848 = vmatprep.subr.mxu0 0.0
        %849 = vmatpush1.msra.mxu0 %v813
        %850 = vmatprep.subr.mxu0 0.0
        %851 = vmatpush1.msra.mxu0 %v812
        %852 = vmatprep.subr.mxu0 0.0
        %853 = vmatpush1.msra.mxu0 %v811
        %854 = vmatprep.subr.mxu0 0.0
        %855 = vmatpush1.msra.mxu0 %v810
        %856 = vmatprep.subr.mxu0 0.0
        %857 = vmatpush1.msra.mxu0 %v809
        %858 = vmatprep.subr.mxu0 0.0
        %859 = vmatpush1.msra.mxu0 %v808
        %860 = vmatprep.subr.mxu0 0.0
        %861 = vmatpush1.msra.mxu0 %v807
        %862 = vmatprep.subr.mxu0 0.0
        %863 = vmatpush2.msra.mxu0 0.0
        %864 = vmatprep.subr.mxu0 0.0
        %865 = vmatpush2.msra.mxu0 0.0
        %866 = vmatprep.subr.mxu0 0.0
        %867 = vmatpush2.msra.mxu0 0.0
        %868 = vmatprep.subr.mxu0 0.0
        %869 = vmatpush2.msra.mxu0 0.0
        %870 = vmatprep.subr.mxu0 0.0
        %871 = vmatpush2.msra.mxu0 0.0
        %872 = vmatprep.subr.mxu0 0.0
        %873 = vmatpush2.msra.mxu0 0.0
        %874 = vmatprep.subr.mxu0 0.0
        %875 = vmatpush2.msra.mxu0 0.0
        %876 = vmatprep.subr.mxu0 0.0
        %877 = vmatpush2.msra.mxu0 0.0
        %878 = vmatprep.subr.mxu0 0.0
        %879 = vmatpush2.msra.mxu0 0.0
        %880 = vmatprep.subr.mxu0 0.0
        %881 = vmatpush2.msra.mxu0 0.0
        %882 = vmatprep.subr.mxu0 0.0
        %883 = vmatpush2.msra.mxu0 0.0
        %884 = vmatprep.subr.mxu0 0.0
        %885 = vmatpush2.msra.mxu0 0.0
        %886 = vmatprep.subr.mxu0 0.0
        %887 = vmatpush2.msra.mxu0 0.0
        %888 = vmatprep.subr.mxu0 0.0
        %889 = vmatpush2.msra.mxu0 0.0
        %890 = vmatprep.subr.mxu0 0.0
        %891 = vmatpush2.msra.mxu0 0.0
        %892 = vmatprep.subr.mxu0 0.0
        %893 = vmatpush2.msra.mxu0 0.0
        %894 = vmatprep.mubr.f32.mxu0 0.0
        %895 = vmatmul.mubr.f32.gmra.mxu0 %v803
        %v896 = vpop.f32.mrf.mxu0
        %v897 = vadd.f32 %v828, %v896
        %v898 = vpop.f32.mrf.mxu0
        %899 = vmatprep.mubr.f32.mxu0 0.0
        %900 = vmatmul.mubr.f32.gmra.mxu0 %v804
        %v901 = vpop.f32.mrf.mxu0
        %v902 = vadd.f32 %v828, %v901
        %v903 = vpop.f32.mrf.mxu0
        %904 = vmatprep.mubr.f32.mxu0 0.0
        %905 = vmatmul.mubr.f32.gmra.mxu0 %v805
        %v906 = vpop.f32.mrf.mxu0
        %v907 = vadd.f32 %v828, %v906
        %v908 = vpop.f32.mrf.mxu0
        %909 = vmatprep.mubr.f32.mxu0 0.0
        %910 = vmatmul.mubr.f32.gmra.mxu0 %v806
        %v911 = vpop.f32.mrf.mxu0
        %v912 = vadd.f32 %v828, %v911
        %v913 = vpop.f32.mrf.mxu0
        %914 = vdwg.mxu0
        %v915 = vadd.s32 %v421, 8
        %v916 = vadd.s32 %v421, 16
        %v917 = vadd.s32 %v421, 24
        %s918 = ssub.s32 %s408, 8
        %v919 = vstv %s918
        %v920 = vadd.s32 %v421, %v919
        %v921 = vadd.s32 %v915, %v919
        %v922 = vadd.s32 %v916, %v919
        %v923 = vadd.s32 %v917, %v919
        %vm924 = vcmp.ge.s32.totalorder %v920, 0
        %vm925 = vcmp.ge.s32.totalorder %v921, 0
        %vm926 = vcmp.ge.s32.totalorder %v922, 0
        %vm927 = vcmp.ge.s32.totalorder %v923, 0
        %vm928 = vcmp.lt.s32.totalorder %v920, 50
        %vm929 = vcmp.lt.s32.totalorder %v921, 50
        %vm930 = vcmp.lt.s32.totalorder %v922, 50
        %vm931 = vcmp.lt.s32.totalorder %v923, 50
        %vm932 = vmand %vm924, %vm928
        %vm933 = vmand %vm925, %vm929
        %vm934 = vmand %vm926, %vm930
        %vm935 = vmand %vm927, %vm931
        %v936 = vsel %vm932, 1, 0
        %v937 = vsel %vm933, 1, 0
        %v938 = vsel %vm934, 1, 0
        %v939 = vsel %vm935, 1, 0
        %vm940 = vcmp.eq.s32.totalorder %v936, 1
        %vm941 = vcmp.eq.s32.totalorder %v937, 1
        %vm942 = vcmp.eq.s32.totalorder %v938, 1
        %vm943 = vcmp.eq.s32.totalorder %v939, 1
        %v944 = vsel %vm940, %v897, 0.0
        %v945 = vsel %vm941, %v902, 0.0
        %v946 = vsel %vm942, %v907, 0.0
        %v947 = vsel %vm943, %v912, 0.0
        %v948 = vld [vmem:[%s7] sm:$0x7f]
        %v949 = vld [vmem:[%s8] sm:$0x1]
        %v950 = vrot.slane %v944, 5
        %v951 = vrot.slane %v945, 5
        %v952 = vrot.slane %v946, 5
        %v953 = vsel %vm422, %v951, %v952
        %v954 = vsel %vm422, %v950, %v951
        %v955 = vlaneseq
        %v956 = vshrl.u32 %v955, 7
        %v957 = vsub.s32 0, %v956
        %v958 = vrot.slane %v948, %v957
        %v959 = vmul.f32 %v954, %v958
        %v960 = vmul.f32 %v953, %v958
        %v961 = vadd.f32 %v959, 0.0
        %v962 = vadd.f32 %v960, 0.0
        %v963 = vrot.slane %v944, 6
        %v964 = vrot.slane %v945, 6
        %v965 = vrot.slane %v946, 6
        %v966 = vsel %vm443, %v964, %v965
        %v967 = vsel %vm443, %v963, %v964
        %v968 = vlaneseq
        %v969 = vshrl.u32 %v968, 7
        %v970 = vsub.s32 1, %v969
        %v971 = vrot.slane %v948, %v970
        %v972 = vmul.f32 %v967, %v971
        %v973 = vmul.f32 %v966, %v971
        %v974 = vadd.f32 %v961, %v972
        %v975 = vadd.f32 %v962, %v973
        %v976 = vrot.slane %v944, 7
        %v977 = vrot.slane %v945, 7
        %v978 = vrot.slane %v946, 7
        %v979 = vsel %vm464, %v977, %v978
        %v980 = vsel %vm464, %v976, %v977
        %v981 = vlaneseq
        %v982 = vshrl.u32 %v981, 7
        %v983 = vsub.s32 2, %v982
        %v984 = vrot.slane %v948, %v983
        %v985 = vmul.f32 %v980, %v984
        %v986 = vmul.f32 %v979, %v984
        %v987 = vadd.f32 %v974, %v985
        %v988 = vadd.f32 %v975, %v986
        %v989 = vlaneseq
        %v990 = vshrl.u32 %v989, 7
        %v991 = vsub.s32 3, %v990
        %v992 = vrot.slane %v948, %v991
        %v993 = vmul.f32 %v945, %v992
        %v994 = vmul.f32 %v946, %v992
        %v995 = vadd.f32 %v987, %v993
        %v996 = vadd.f32 %v988, %v994
        %v997 = vrot.slane %v945, 1
        %v998 = vrot.slane %v946, 1
        %v999 = vrot.slane %v947, 1
        %v1000 = vsel %vm497, %v998, %v999
        %v1001 = vsel %vm497, %v997, %v998
        %v1002 = vlaneseq
        %v1003 = vshrl.u32 %v1002, 7
        %v1004 = vsub.s32 4, %v1003
        %v1005 = vrot.slane %v948, %v1004
        %v1006 = vmul.f32 %v1001, %v1005
        %v1007 = vmul.f32 %v1000, %v1005
        %v1008 = vadd.f32 %v995, %v1006
        %v1009 = vadd.f32 %v996, %v1007
        %v1010 = vrot.slane %v945, 2
        %v1011 = vrot.slane %v946, 2
        %v1012 = vrot.slane %v947, 2
        %v1013 = vsel %vm518, %v1011, %v1012
        %v1014 = vsel %vm518, %v1010, %v1011
        %v1015 = vlaneseq
        %v1016 = vshrl.u32 %v1015, 7
        %v1017 = vsub.s32 5, %v1016
        %v1018 = vrot.slane %v948, %v1017
        %v1019 = vmul.f32 %v1014, %v1018
        %v1020 = vmul.f32 %v1013, %v1018
        %v1021 = vadd.f32 %v1008, %v1019
        %v1022 = vadd.f32 %v1009, %v1020
        %v1023 = vrot.slane %v945, 3
        %v1024 = vrot.slane %v946, 3
        %v1025 = vrot.slane %v947, 3
        %v1026 = vsel %vm539, %v1024, %v1025
        %v1027 = vsel %vm539, %v1023, %v1024
        %v1028 = vlaneseq
        %v1029 = vshrl.u32 %v1028, 7
        %v1030 = vsub.s32 6, %v1029
        %v1031 = vrot.slane %v948, %v1030
        %v1032 = vmul.f32 %v1027, %v1031
        %v1033 = vmul.f32 %v1026, %v1031
        %v1034 = vadd.f32 %v1021, %v1032
        %v1035 = vadd.f32 %v1022, %v1033
        %v1037 = vlaneseq
        %v1038 = vshrl.u32 %v1037, 7
        %v1039 = vsub.s32 0, %v1038
        %v1040 = vrot.slane %v949, %v1039
        %v1042 = vadd.f32 %v1034, %v1040
        %v1043 = vadd.f32 %v1035, %v1040
        %1044 = vst [vmem:[%s406] sm:$0xff] %v1042
        %1045 = vst [vmem:[%s406 + $0x8] sm:$0xff] %v1043
        %s1046 = sand.u32 %s244, 1
        %s1047 = scalar_lea.sflag [#allocation4], %s1046
        %s1048 = sand.u32 %s244, 1
        %s1049 = smul.addr %s1048, 16
        %s1050 = scalar_lea.vmem [#allocation10], %s1049
        // Predicated region
        $region73: #{tpu_custom_call.1} parent=55 // pred_check
          %p1051 = pneg %p254
        $region74: #{tpu_custom_call.1} parent=55 // pred_check_branch
          %1053 = sbr.rel (%p1051) target = $region76
        $region75: #{tpu_custom_call.1} parent=55 // pred_region
          %s1054 = smul.u32 2, %s33
          %s1056 = ssub.s32 256, 256
          %1057 = vsyncadd %s1047, %s1056
          %s1058 = smul.addr %s32, 8
          %s1059 = sadd.s32 %s1054, %s1058
          %s1060 = smul.addr %s1059, 128
          %s1061 = scalar_lea.hbm %s9, %s1060
          %s1062 = sshll.u32 %s1050, 4
          %s1063 = int_to_ptr.vmem [resolvable:$true] %s1062
          %1068 = dma.vmem_to_hbm [thread:$0]  %s1063, 256, %s1061, %s1047, 128, 128, 8
        $region76: #{tpu_custom_call.1} parent=55 // pred_fallthru
          _
      $region56: #{tpu_custom_call.1} parent=5 // pred_fallthru
        _
      %p1069 = scmp.le.s32.totalorder 2, %s23
      // Predicated region
      $region77: #{tpu_custom_call.1} parent=5 // pred_check
        %p1070 = pneg %p1069
      $region78: #{tpu_custom_call.1} parent=5 // pred_check_branch
        %1072 = sbr.rel (%p1070) target = $region80
      $region79: #{tpu_custom_call.1} parent=5 // pred_region
        %s1073 = ssub.s32 %s23, 2
        // Predicated region
        $region81: #{tpu_custom_call.1} parent=79 // pred_check
          %p1074 = pneg %p260
        $region82: #{tpu_custom_call.1} parent=79 // pred_check_branch
          %1076 = sbr.rel (%p1074) target = $region84
        $region83: #{tpu_custom_call.1} parent=79 // pred_region
          %s1077 = sand.u32 %s245, 1
          %s1078 = scalar_lea.sflag [#allocation4], %s1077
          %s1079 = sand.u32 %s245, 1
          %s1080 = smul.addr %s1079, 16
          %s1081 = scalar_lea.vmem [#allocation10], %s1080
          %1082 = dma.done %s1078, 256
        $region84: #{tpu_custom_call.1} parent=79 // pred_fallthru
          _
      $region80: #{tpu_custom_call.1} parent=5 // pred_fallthru
        _
    $region6: #{tpu_custom_call.1} parent=1 // loop_footer
      %s27 = sadd.s32 1, %s23
    $region7: #{tpu_custom_call.1} parent=1 // loop_footer_branch
      %22 = sbr.rel target = $region3
    $region8: #{tpu_custom_call.1} parent=1 // loop_exit
      _
    %1083 = vsyncpa [#allocation3], 1
    %s1084 = scalar_lea.sflag [#allocation3], 1
    %1085 = vsyncpa %s1084, 1
    %1086 = vsyncpa [#allocation6], 1
    %1087 = vsyncpa [#allocation9], 1
    %1088 = vsyncpa [#allocation4], 1
    %s1089 = scalar_lea.sflag [#allocation4], 1
    %1090 = vsyncpa %s1089, 1

// kernel: tpu_custom_call.1
$region0: #{tpu_custom_call.1}
  #allocation0 [shape = 'u32[]', space=smem, size = 0x4, offset = 0x4, fixed_abs, tag = 'smem constant byte address 0x4 - core index']
  #allocation1 [shape = 'u32[144,128]{1,0:T(1,128)}', space=vmem, size = 0x12000, scoped, tag = 'internal scratch']
  %s0 = inlined_call_operand.hbm [shape: f32[2,80,128], index: 0, kind: input, shape index: {}]
  %s1 = inlined_call_operand.hbm [shape: f32[7,128], index: 1, kind: input, shape index: {}]
  %s2 = inlined_call_operand.vmem [shape: f32[1,128], index: 2, kind: input, shape index: {}]
  %s3 = inlined_call_operand.hbm [shape: f32[128,256], index: 3, kind: input, shape index: {}]
  %s4 = inlined_call_operand.vmem [shape: f32[1,256], index: 4, kind: input, shape index: {}]
  %s5 = inlined_call_operand.hbm [shape: f32[128,128], index: 5, kind: input, shape index: {}]
  %s6 = inlined_call_operand.vmem [shape: f32[1,128], index: 6, kind: input, shape index: {}]
  %s7 = inlined_call_operand.vmem [shape: f32[7,128], index: 7, kind: input, shape index: {}]
  %s8 = inlined_call_operand.vmem [shape: f32[1,128], index: 8, kind: input, shape index: {}]
  %s9 = inlined_call_operand.hbm [shape: f32[2,64,128], index: 9, kind: output, shape index: {}]
  %s10 = sld [smem:[#allocation0]]
  $region85: #{tpu_custom_call.1} parent=0
    _
  %s12 = ssub.s32 1, %s10
  %s13 = scalar_select 0, %s12, %s10
  $region1: #{tpu_custom_call.1} parent=0
    #allocation2 [shape = 'u8[81920]{0}', space=vmem, size = 0x14000, scoped, tag = 'input window, operand 0']
    #allocation3 [shape = 's32[2]{0}', space=sflag, size = 0x8, scoped, tag = 'scoped memory for tpu_custom_call.1']
    #allocation4 [shape = 's32[2]{0}', space=sflag, size = 0x8, scoped, tag = 'scoped memory for tpu_custom_call.1']
    #allocation5 [shape = 'u8[4096]{0}', space=vmem, size = 0x1000, scoped, tag = 'input window, operand 1, single buffered']
    #allocation6 [shape = 's32[1]{0}', space=sflag, size = 0x4, scoped, tag = 'scoped memory for tpu_custom_call.1']
    #allocation7 [shape = 'u8[131072]{0}', space=vmem, size = 0x20000, scoped, tag = 'input window, operand 3, single buffered']
    #allocation8 [shape = 'u8[65536]{0}', space=vmem, size = 0x10000, scoped, tag = 'input window, operand 5, single buffered']
    #allocation9 [shape = 's32[1]{0}', space=sflag, size = 0x4, scoped, tag = 'scoped memory for tpu_custom_call.1']
    #allocation10 [shape = 'u8[16384]{0}', space=vmem, size = 0x4000, scoped, tag = 'output window, operand 0']
    %14 = vsyncpa [#allocation3], 0
    %s15 = scalar_lea.sflag [#allocation3], 1
    %16 = vsyncpa %s15, 0
    %17 = vsyncpa [#allocation6], 0
    %18 = vsyncpa [#allocation9], 0
    %19 = vsyncpa [#allocation4], 0
    %s20 = scalar_lea.sflag [#allocation4], 1
    %21 = vsyncpa %s20, 0
    loop: start=0, step=1, limit=10
    $region2: #{tpu_custom_call.1} parent=1 // loop_pre_header
      _
    $region3: #{tpu_custom_call.1} parent=1 // loop_header
      %s23 = sphi 0, %s27
      %p24 = scmp.ge.s32.totalorder %s23, 10
      %s30 = sphi 0, %s42
      %s31 = sphi 0, %s38
      %s32 = sphi 0, %s30
      %s33 = sphi 0, %s31
      %s34 = sphi 0, %s32
      %s35 = sphi 0, %s33
      %s45 = sphi 0, %s47
      %s48 = sphi 0, %s45
      %s49 = sphi 0, %s48
      %s65 = sphi 0, %s49
      %s69 = sphi 0, %s69
      %s71 = sphi 0, %s69
      %s72 = sphi 0, %s71
      %s86 = sphi 0, %s72
      %s90 = sphi 0, %s90
      %s92 = sphi 0, %s90
      %s93 = sphi 0, %s92
      %s107 = sphi 0, %s93
      %s111 = sphi 0, %s111
      %s113 = sphi 0, %s111
      %s114 = sphi 0, %s113
      %s128 = sphi 0, %s114
      %s132 = sphi 0, %s132
      %s134 = sphi 0, %s132
      %s135 = sphi 0, %s134
      %s149 = sphi 0, %s135
      %s153 = sphi 0, %s153
      %s155 = sphi 0, %s153
      %s156 = sphi 0, %s155
      %s170 = sphi 0, %s156
      %s174 = sphi 0, %s174
      %s176 = sphi 0, %s174
      %s177 = sphi 0, %s176
      %s191 = sphi 0, %s177
      %s195 = sphi 0, %s195
      %s197 = sphi 0, %s195
      %s198 = sphi 0, %s197
      %s212 = sphi 0, %s198
      %s216 = sphi 0, %s216
      %s218 = sphi 0, %s216
      %s219 = sphi 0, %s218
      %s233 = sphi 0, %s219
      %s241 = sphi 0, %s243
      %s244 = sphi 0, %s241
      %s245 = sphi 0, %s244
      %s261 = sphi 0, %s245
    $region4: #{tpu_custom_call.1} parent=1 // loop_header_branch
      %26 = sbr.rel (%p24) target = $region8
    $region5: #{tpu_custom_call.1} parent=1 // loop_body
      %s28 = ssub.s32 %s23, 1
      %s29 = ssub.s32 %s23, 2
      %s36 = sadd.s32 1, %s31
      %p37 = scmp.ge.s32.totalorder %s36, 4
      %s38 = scalar_select %p37, 0, %s36
      %s39 = sadd.s32 1, %s30
      %s40 = scalar_select %p37, %s39, %s30
      %p41 = scmp.ge.s32.totalorder %s40, 2
      %s42 = scalar_select %p41, 0, %s40
      %s43 = ssub.s32 %s30, %s42
      %p44 = scmp.eq.s32.totalorder %s43, 0
      %s46 = sadd.s32 %s45, 1
      %s47 = scalar_select %p44, %s45, %s46
      %p50 = pneg %p44
      %p51 = scmp.eq.s32.totalorder %s23, 7
      %p52 = por %p50, %p51
      %p53 = scmp.ne.s32.totalorder %s45, %s48
      %p54 = scmp.eq.s32.totalorder %s23, 0
      %p55 = por %p53, %p54
      %p56 = scmp.ne.s32.totalorder %s45, %s48
      %p57 = scmp.eq.s32.totalorder %s28, 7
      %p58 = por %p56, %p57
      %p59 = scmp.ne.s32.totalorder %s48, %s49
      %p60 = scmp.eq.s32.totalorder %s28, 0
      %p61 = por %p59, %p60
      %p62 = scmp.ne.s32.totalorder %s48, %s49
      %p63 = scmp.eq.s32.totalorder %s29, 7
      %p64 = por %p62, %p63
      %p66 = scmp.ne.s32.totalorder %s49, %s65
      %p67 = scmp.eq.s32.totalorder %s29, 0
      %p68 = por %p66, %p67
      %s70 = sadd.s32 %s69, 1
      %p73 = scmp.eq.s32.totalorder %s23, 7
      %p74 = scmp.ne.s32.totalorder %s69, %s71
      %p75 = scmp.eq.s32.totalorder %s23, 0
      %p76 = por %p74, %p75
      %p77 = scmp.ne.s32.totalorder %s69, %s71
      %p78 = scmp.eq.s32.totalorder %s28, 7
      %p79 = por %p77, %p78
      %p80 = scmp.ne.s32.totalorder %s71, %s72
      %p81 = scmp.eq.s32.totalorder %s28, 0
      %p82 = por %p80, %p81
      %p83 = scmp.ne.s32.totalorder %s71, %s72
      %p84 = scmp.eq.s32.totalorder %s29, 7
      %p85 = por %p83, %p84
      %p87 = scmp.ne.s32.totalorder %s72, %s86
      %p88 = scmp.eq.s32.totalorder %s29, 0
      %p89 = por %p87, %p88
      %s91 = sadd.s32 %s90, 1
      %p94 = scmp.eq.s32.totalorder %s23, 7
      %p95 = scmp.ne.s32.totalorder %s90, %s92
      %p96 = scmp.eq.s32.totalorder %s23, 0
      %p97 = por %p95, %p96
      %p98 = scmp.ne.s32.totalorder %s90, %s92
      %p99 = scmp.eq.s32.totalorder %s28, 7
      %p100 = por %p98, %p99
      %p101 = scmp.ne.s32.totalorder %s92, %s93
      %p102 = scmp.eq.s32.totalorder %s28, 0
      %p103 = por %p101, %p102
      %p104 = scmp.ne.s32.totalorder %s92, %s93
      %p105 = scmp.eq.s32.totalorder %s29, 7
      %p106 = por %p104, %p105
      %p108 = scmp.ne.s32.totalorder %s93, %s107
      %p109 = scmp.eq.s32.totalorder %s29, 0
      %p110 = por %p108, %p109
      %s112 = sadd.s32 %s111, 1
      %p115 = scmp.eq.s32.totalorder %s23, 7
      %p116 = scmp.ne.s32.totalorder %s111, %s113
      %p117 = scmp.eq.s32.totalorder %s23, 0
      %p118 = por %p116, %p117
      %p119 = scmp.ne.s32.totalorder %s111, %s113
      %p120 = scmp.eq.s32.totalorder %s28, 7
      %p121 = por %p119, %p120
      %p122 = scmp.ne.s32.totalorder %s113, %s114
      %p123 = scmp.eq.s32.totalorder %s28, 0
      %p124 = por %p122, %p123
      %p125 = scmp.ne.s32.totalorder %s113, %s114
      %p126 = scmp.eq.s32.totalorder %s29, 7
      %p127 = por %p125, %p126
      %p129 = scmp.ne.s32.totalorder %s114, %s128
      %p130 = scmp.eq.s32.totalorder %s29, 0
      %p131 = por %p129, %p130
      %s133 = sadd.s32 %s132, 1
      %p136 = scmp.eq.s32.totalorder %s23, 7
      %p137 = scmp.ne.s32.totalorder %s132, %s134
      %p138 = scmp.eq.s32.totalorder %s23, 0
      %p139 = por %p137, %p138
      %p140 = scmp.ne.s32.totalorder %s132, %s134
      %p141 = scmp.eq.s32.totalorder %s28, 7
      %p142 = por %p140, %p141
      %p143 = scmp.ne.s32.totalorder %s134, %s135
      %p144 = scmp.eq.s32.totalorder %s28, 0
      %p145 = por %p143, %p144
      %p146 = scmp.ne.s32.totalorder %s134, %s135
      %p147 = scmp.eq.s32.totalorder %s29, 7
      %p148 = por %p146, %p147
      %p150 = scmp.ne.s32.totalorder %s135, %s149
      %p151 = scmp.eq.s32.totalorder %s29, 0
      %p152 = por %p150, %p151
      %s154 = sadd.s32 %s153, 1
      %p157 = scmp.eq.s32.totalorder %s23, 7
      %p158 = scmp.ne.s32.totalorder %s153, %s155
      %p159 = scmp.eq.s32.totalorder %s23, 0
      %p160 = por %p158, %p159
      %p161 = scmp.ne.s32.totalorder %s153, %s155
      %p162 = scmp.eq.s32.totalorder %s28, 7
      %p163 = por %p161, %p162
      %p164 = scmp.ne.s32.totalorder %s155, %s156
      %p165 = scmp.eq.s32.totalorder %s28, 0
      %p166 = por %p164, %p165
      %p167 = scmp.ne.s32.totalorder %s155, %s156
      %p168 = scmp.eq.s32.totalorder %s29, 7
      %p169 = por %p167, %p168
      %p171 = scmp.ne.s32.totalorder %s156, %s170
      %p172 = scmp.eq.s32.totalorder %s29, 0
      %p173 = por %p171, %p172
      %s175 = sadd.s32 %s174, 1
      %p178 = scmp.eq.s32.totalorder %s23, 7
      %p179 = scmp.ne.s32.totalorder %s174, %s176
      %p180 = scmp.eq.s32.totalorder %s23, 0
      %p181 = por %p179, %p180
      %p182 = scmp.ne.s32.totalorder %s174, %s176
      %p183 = scmp.eq.s32.totalorder %s28, 7
      %p184 = por %p182, %p183
      %p185 = scmp.ne.s32.totalorder %s176, %s177
      %p186 = scmp.eq.s32.totalorder %s28, 0
      %p187 = por %p185, %p186
      %p188 = scmp.ne.s32.totalorder %s176, %s177
      %p189 = scmp.eq.s32.totalorder %s29, 7
      %p190 = por %p188, %p189
      %p192 = scmp.ne.s32.totalorder %s177, %s191
      %p193 = scmp.eq.s32.totalorder %s29, 0
      %p194 = por %p192, %p193
      %s196 = sadd.s32 %s195, 1
      %p199 = scmp.eq.s32.totalorder %s23, 7
      %p200 = scmp.ne.s32.totalorder %s195, %s197
      %p201 = scmp.eq.s32.totalorder %s23, 0
      %p202 = por %p200, %p201
      %p203 = scmp.ne.s32.totalorder %s195, %s197
      %p204 = scmp.eq.s32.totalorder %s28, 7
      %p205 = por %p203, %p204
      %p206 = scmp.ne.s32.totalorder %s197, %s198
      %p207 = scmp.eq.s32.totalorder %s28, 0
      %p208 = por %p206, %p207
      %p209 = scmp.ne.s32.totalorder %s197, %s198
      %p210 = scmp.eq.s32.totalorder %s29, 7
      %p211 = por %p209, %p210
      %p213 = scmp.ne.s32.totalorder %s198, %s212
      %p214 = scmp.eq.s32.totalorder %s29, 0
      %p215 = por %p213, %p214
      %s217 = sadd.s32 %s216, 1
      %p220 = scmp.eq.s32.totalorder %s23, 7
      %p221 = scmp.ne.s32.totalorder %s216, %s218
      %p222 = scmp.eq.s32.totalorder %s23, 0
      %p223 = por %p221, %p222
      %p224 = scmp.ne.s32.totalorder %s216, %s218
      %p225 = scmp.eq.s32.totalorder %s28, 7
      %p226 = por %p224, %p225
      %p227 = scmp.ne.s32.totalorder %s218, %s219
      %p228 = scmp.eq.s32.totalorder %s28, 0
      %p229 = por %p227, %p228
      %p230 = scmp.ne.s32.totalorder %s218, %s219
      %p231 = scmp.eq.s32.totalorder %s29, 7
      %p232 = por %p230, %p231
      %p234 = scmp.ne.s32.totalorder %s219, %s233
      %p235 = scmp.eq.s32.totalorder %s29, 0
      %p236 = por %p234, %p235
      %s237 = ssub.s32 %s30, %s42
      %s238 = ssub.s32 %s31, %s38
      %s239 = sor.u32 %s237, %s238
      %p240 = scmp.eq.s32.totalorder %s239, 0
      %s242 = sadd.s32 %s241, 1
      %s243 = scalar_select %p240, %s241, %s242
      %p246 = pneg %p240
      %p247 = scmp.eq.s32.totalorder %s23, 7
      %p248 = por %p246, %p247
      %p249 = scmp.ne.s32.totalorder %s241, %s244
      %p250 = scmp.eq.s32.totalorder %s23, 0
      %p251 = por %p249, %p250
      %p252 = scmp.ne.s32.totalorder %s241, %s244
      %p253 = scmp.eq.s32.totalorder %s28, 7
      %p254 = por %p252, %p253
      %p255 = scmp.ne.s32.totalorder %s244, %s245
      %p256 = scmp.eq.s32.totalorder %s28, 0
      %p257 = por %p255, %p256
      %p258 = scmp.ne.s32.totalorder %s244, %s245
      %p259 = scmp.eq.s32.totalorder %s29, 7
      %p260 = por %p258, %p259
      %p262 = scmp.ne.s32.totalorder %s245, %s261
      %p263 = scmp.eq.s32.totalorder %s29, 0
      %p264 = por %p262, %p263
      %p265 = scmp.le.s32.totalorder 1, %s23
      %p266 = scmp.lt.s32.totalorder %s23, 9
      %p267 = pnand %p265, %p266
      %p268 = pneg %p267
      // Predicated region
      $region9: #{tpu_custom_call.1} parent=5 // pred_check
        _
      $region10: #{tpu_custom_call.1} parent=5 // pred_check_branch
        %270 = sbr.rel (%p267) target = $region12
      $region11: #{tpu_custom_call.1} parent=5 // pred_region
        %s271 = ssub.s32 %s23, 1
        // Predicated region
        $region13: #{tpu_custom_call.1} parent=11 // pred_check
          %p272 = pneg %p82
        $region14: #{tpu_custom_call.1} parent=11 // pred_check_branch
          %274 = sbr.rel (%p272) target = $region16
        $region15: #{tpu_custom_call.1} parent=11 // pred_region
          %s276 = ssub.s32 128, 128
          %277 = vsyncadd [#allocation6], %s276
          %s279 = sshll.u32 [#allocation5], 4
          %s280 = int_to_ptr.vmem [resolvable:$true] %s279
          %282 = dma.hbm_to_vmem [thread:$0]  %s1, 128, %s280, [#allocation6]
        $region16: #{tpu_custom_call.1} parent=11 // pred_fallthru
          _
        // Predicated region
        $region17: #{tpu_custom_call.1} parent=11 // pred_check
          %p283 = pneg %p103
        $region18: #{tpu_custom_call.1} parent=11 // pred_check_branch
          %285 = sbr.rel (%p283) target = $region20
        $region19: #{tpu_custom_call.1} parent=11 // pred_region
          _
        $region20: #{tpu_custom_call.1} parent=11 // pred_fallthru
          _
        // Predicated region
        $region21: #{tpu_custom_call.1} parent=11 // pred_check
          %p286 = pneg %p124
        $region22: #{tpu_custom_call.1} parent=11 // pred_check_branch
          %288 = sbr.rel (%p286) target = $region24
        $region23: #{tpu_custom_call.1} parent=11 // pred_region
          %s290 = ssub.s32 4096, 4096
          %291 = vsyncadd [#allocation6], %s290
          %s292 = sshll.u32 [#allocation7], 4
          %s293 = int_to_ptr.vmem [resolvable:$true] %s292
          %298 = dma.hbm_to_vmem [thread:$0]  %s3, 4096, %s293, [#allocation6], 256, 256, 16
        $region24: #{tpu_custom_call.1} parent=11 // pred_fallthru
          _
        // Predicated region
        $region25: #{tpu_custom_call.1} parent=11 // pred_check
          %p299 = pneg %p145
        $region26: #{tpu_custom_call.1} parent=11 // pred_check_branch
          %301 = sbr.rel (%p299) target = $region28
        $region27: #{tpu_custom_call.1} parent=11 // pred_region
          _
        $region28: #{tpu_custom_call.1} parent=11 // pred_fallthru
          _
        // Predicated region
        $region29: #{tpu_custom_call.1} parent=11 // pred_check
          %p302 = pneg %p166
        $region30: #{tpu_custom_call.1} parent=11 // pred_check_branch
          %304 = sbr.rel (%p302) target = $region32
        $region31: #{tpu_custom_call.1} parent=11 // pred_region
          %s306 = ssub.s32 2048, 2048
          %307 = vsyncadd [#allocation9], %s306
          %s308 = sshll.u32 [#allocation8], 4
          %s309 = int_to_ptr.vmem [resolvable:$true] %s308
          %314 = dma.hbm_to_vmem [thread:$0]  %s5, 2048, %s309, [#allocation9], 128, 128, 8
        $region32: #{tpu_custom_call.1} parent=11 // pred_fallthru
          _
        // Predicated region
        $region33: #{tpu_custom_call.1} parent=11 // pred_check
          %p315 = pneg %p187
        $region34: #{tpu_custom_call.1} parent=11 // pred_check_branch
          %317 = sbr.rel (%p315) target = $region36
        $region35: #{tpu_custom_call.1} parent=11 // pred_region
          _
        $region36: #{tpu_custom_call.1} parent=11 // pred_fallthru
          _
        // Predicated region
        $region37: #{tpu_custom_call.1} parent=11 // pred_check
          %p318 = pneg %p208
        $region38: #{tpu_custom_call.1} parent=11 // pred_check_branch
          %320 = sbr.rel (%p318) target = $region40
        $region39: #{tpu_custom_call.1} parent=11 // pred_region
          _
        $region40: #{tpu_custom_call.1} parent=11 // pred_fallthru
          _
        // Predicated region
        $region41: #{tpu_custom_call.1} parent=11 // pred_check
          %p321 = pneg %p229
        $region42: #{tpu_custom_call.1} parent=11 // pred_check_branch
          %323 = sbr.rel (%p321) target = $region44
        $region43: #{tpu_custom_call.1} parent=11 // pred_region
          _
        $region44: #{tpu_custom_call.1} parent=11 // pred_fallthru
          _
      $region12: #{tpu_custom_call.1} parent=5 // pred_fallthru
        _
      %p324 = scmp.lt.s32.totalorder %s23, 8
      // Predicated region
      $region45: #{tpu_custom_call.1} parent=5 // pred_check
        %p325 = pneg %p324
      $region46: #{tpu_custom_call.1} parent=5 // pred_check_branch
        %327 = sbr.rel (%p325) target = $region48
      $region47: #{tpu_custom_call.1} parent=5 // pred_region
        // Predicated region
        $region49: #{tpu_custom_call.1} parent=47 // pred_check
          %p328 = pneg %p55
        $region50: #{tpu_custom_call.1} parent=47 // pred_check_branch
          %330 = sbr.rel (%p328) target = $region52
        $region51: #{tpu_custom_call.1} parent=47 // pred_region
          %s331 = sand.u32 %s45, 1
          %s332 = scalar_lea.sflag [#allocation3], %s331
          %s333 = sand.u32 %s45, 1
          %s334 = smul.addr %s333, 80
          %s335 = scalar_lea.vmem [#allocation2], %s334
          %s337 = ssub.s32 1280, 1280
          %338 = vsyncadd %s332, %s337
          %s339 = smul.addr %s30, 10
          %s340 = smul.addr %s339, 128
          %s341 = scalar_lea.hbm %s0, %s340
          %s342 = sshll.u32 %s335, 4
          %s343 = int_to_ptr.vmem [resolvable:$true] %s342
          %348 = dma.hbm_to_vmem [thread:$0]  %s341, 1280, %s343, %s332, 128, 128, 8
        $region52: #{tpu_custom_call.1} parent=47 // pred_fallthru
          _
      $region48: #{tpu_custom_call.1} parent=5 // pred_fallthru
        _
      %p349 = scmp.le.s32.totalorder 1, %s23
      %p350 = scmp.lt.s32.totalorder %s23, 9
      %p351 = pnand %p349, %p350
      %p352 = pneg %p351
      // Predicated region
      $region53: #{tpu_custom_call.1} parent=5 // pred_check
        _
      $region54: #{tpu_custom_call.1} parent=5 // pred_check_branch
        %354 = sbr.rel (%p351) target = $region56
      $region55: #{tpu_custom_call.1} parent=5 // pred_region
        %s355 = ssub.s32 %s23, 1
        %s356 = sand.u32 %s48, 1
        %s357 = scalar_lea.sflag [#allocation3], %s356
        %s358 = sand.u32 %s48, 1
        %s359 = smul.addr %s358, 80
        %s360 = scalar_lea.vmem [#allocation2], %s359
        // Predicated region
        $region57: #{tpu_custom_call.1} parent=55 // pred_check
          %p361 = pneg %p61
        $region58: #{tpu_custom_call.1} parent=55 // pred_check_branch
          %363 = sbr.rel (%p361) target = $region60
        $region59: #{tpu_custom_call.1} parent=55 // pred_region
          %364 = dma.done %s357, 1280
        $region60: #{tpu_custom_call.1} parent=55 // pred_fallthru
          _
        // Predicated region
        $region61: #{tpu_custom_call.1} parent=55 // pred_check
          %p365 = pneg %p82
        $region62: #{tpu_custom_call.1} parent=55 // pred_check_branch
          %367 = sbr.rel (%p365) target = $region64
        $region63: #{tpu_custom_call.1} parent=55 // pred_region
          %368 = dma.done [#allocation6], 128
        $region64: #{tpu_custom_call.1} parent=55 // pred_fallthru
          _
        // Predicated region
        $region65: #{tpu_custom_call.1} parent=55 // pred_check
          %p369 = pneg %p124
        $region66: #{tpu_custom_call.1} parent=55 // pred_check_branch
          %371 = sbr.rel (%p369) target = $region68
        $region67: #{tpu_custom_call.1} parent=55 // pred_region
          %372 = dma.done [#allocation6], 4096
        $region68: #{tpu_custom_call.1} parent=55 // pred_fallthru
          _
        // Predicated region
        $region69: #{tpu_custom_call.1} parent=55 // pred_check
          %p373 = pneg %p166
        $region70: #{tpu_custom_call.1} parent=55 // pred_check_branch
          %375 = sbr.rel (%p373) target = $region72
        $region71: #{tpu_custom_call.1} parent=55 // pred_region
          %376 = dma.done [#allocation9], 2048
        $region72: #{tpu_custom_call.1} parent=55 // pred_fallthru
          _
        %s377 = sand.u32 %s48, 1
        %s378 = scalar_lea.sflag [#allocation3], %s377
        %s379 = sand.u32 %s48, 1
        %s380 = smul.addr %s379, 80
        %s381 = scalar_lea.vmem [#allocation2], %s380
        %p382 = pneg %p61
        %p383 = pneg %p58
        %p384 = pneg %p82
        %p385 = pneg %p79
        %p386 = pneg %p103
        %p387 = pneg %p100
        %p388 = pneg %p124
        %p389 = pneg %p121
        %p390 = pneg %p145
        %p391 = pneg %p142
        %p392 = pneg %p166
        %p393 = pneg %p163
        %p394 = pneg %p187
        %p395 = pneg %p184
        %p396 = pneg %p208
        %p397 = pneg %p205
        %p398 = pneg %p229
        %p399 = pneg %p226
        %p400 = pneg %p257
        %p401 = pneg %p254
        %s402 = sand.u32 %s244, 1
        %s403 = scalar_lea.sflag [#allocation4], %s402
        %s404 = sand.u32 %s244, 1
        %s405 = smul.addr %s404, 16
        %s406 = scalar_lea.vmem [#allocation10], %s405
        %s407 = smul.u32 2, %s33
        %s408 = smul.u32 %s33, 16
        %s409 = scalar_lea.vmem %s360, %s408 [#allocation2]
        %v410 = vld [vmem:[%s409] sm:$0xff]
        %v411 = vld [vmem:[%s409 + $0x8] sm:$0xff]
        %v412 = vld [vmem:[%s409 + $0x10] sm:$0xff]
        %v413 = vld [vmem:[%s409 + $0x18] sm:$0xff]
        %v414 = vld [vmem:[#allocation5] sm:$0x7f]
        %v415 = vld [vmem:[%s2] sm:$0x1]
        %v416 = vrot.slane %v410, 5
        %v417 = vrot.slane %v411, 5
        %v418 = vrot.slane %v412, 5
        %v419 = vrot.slane %v413, 5
        %v420 = vlaneseq
        %v421 = vshrl.u32 %v420, 7
        %vm422 = vcmp.lt.s32.totalorder %v421, 3
        %v423 = vsel %vm422, %v418, %v419
        %v424 = vsel %vm422, %v417, %v418
        %v425 = vsel %vm422, %v416, %v417
        %v426 = vsel %vm422, %v419, %v416
        %v427 = vlaneseq
        %v428 = vshrl.u32 %v427, 7
        %v429 = vsub.s32 0, %v428
        %v430 = vrot.slane %v414, %v429
        %v431 = vmul.f32 %v426, %v430
        %v432 = vmul.f32 %v425, %v430
        %v433 = vmul.f32 %v424, %v430
        %v434 = vmul.f32 %v423, %v430
        %v435 = vadd.f32 %v431, 0.0
        %v436 = vadd.f32 %v432, 0.0
        %v437 = vadd.f32 %v433, 0.0
        %v438 = vadd.f32 %v434, 0.0
        %v439 = vrot.slane %v410, 6
        %v440 = vrot.slane %v411, 6
        %v441 = vrot.slane %v412, 6
        %v442 = vrot.slane %v413, 6
        %vm443 = vcmp.lt.s32.totalorder %v421, 2
        %v444 = vsel %vm443, %v441, %v442
        %v445 = vsel %vm443, %v440, %v441
        %v446 = vsel %vm443, %v439, %v440
        %v447 = vsel %vm443, %v442, %v439
        %v448 = vlaneseq
        %v449 = vshrl.u32 %v448, 7
        %v450 = vsub.s32 1, %v449
        %v451 = vrot.slane %v414, %v450
        %v452 = vmul.f32 %v447, %v451
        %v453 = vmul.f32 %v446, %v451
        %v454 = vmul.f32 %v445, %v451
        %v455 = vmul.f32 %v444, %v451
        %v456 = vadd.f32 %v435, %v452
        %v457 = vadd.f32 %v436, %v453
        %v458 = vadd.f32 %v437, %v454
        %v459 = vadd.f32 %v438, %v455
        %v460 = vrot.slane %v410, 7
        %v461 = vrot.slane %v411, 7
        %v462 = vrot.slane %v412, 7
        %v463 = vrot.slane %v413, 7
        %vm464 = vcmp.lt.s32.totalorder %v421, 1
        %v465 = vsel %vm464, %v462, %v463
        %v466 = vsel %vm464, %v461, %v462
        %v467 = vsel %vm464, %v460, %v461
        %v468 = vsel %vm464, %v463, %v460
        %v469 = vlaneseq
        %v470 = vshrl.u32 %v469, 7
        %v471 = vsub.s32 2, %v470
        %v472 = vrot.slane %v414, %v471
        %v473 = vmul.f32 %v468, %v472
        %v474 = vmul.f32 %v467, %v472
        %v475 = vmul.f32 %v466, %v472
        %v476 = vmul.f32 %v465, %v472
        %v477 = vadd.f32 %v456, %v473
        %v478 = vadd.f32 %v457, %v474
        %v479 = vadd.f32 %v458, %v475
        %v480 = vadd.f32 %v459, %v476
        %v481 = vlaneseq
        %v482 = vshrl.u32 %v481, 7
        %v483 = vsub.s32 3, %v482
        %v484 = vrot.slane %v414, %v483
        %v485 = vmul.f32 %v410, %v484
        %v486 = vmul.f32 %v411, %v484
        %v487 = vmul.f32 %v412, %v484
        %v488 = vmul.f32 %v413, %v484
        %v489 = vadd.f32 %v477, %v485
        %v490 = vadd.f32 %v478, %v486
        %v491 = vadd.f32 %v479, %v487
        %v492 = vadd.f32 %v480, %v488
        %v493 = vrot.slane %v410, 1
        %v494 = vrot.slane %v411, 1
        %v495 = vrot.slane %v412, 1
        %v496 = vrot.slane %v413, 1
        %vm497 = vcmp.lt.s32.totalorder %v421, 7
        %v498 = vsel %vm497, %v495, %v496
        %v499 = vsel %vm497, %v494, %v495
        %v500 = vsel %vm497, %v493, %v494
        %v501 = vsel %vm497, %v496, %v493
        %v502 = vlaneseq
        %v503 = vshrl.u32 %v502, 7
        %v504 = vsub.s32 4, %v503
        %v505 = vrot.slane %v414, %v504
        %v506 = vmul.f32 %v500, %v505
        %v507 = vmul.f32 %v499, %v505
        %v508 = vmul.f32 %v498, %v505
        %v509 = vmul.f32 %v501, %v505
        %v510 = vadd.f32 %v489, %v506
        %v511 = vadd.f32 %v490, %v507
        %v512 = vadd.f32 %v491, %v508
        %v513 = vadd.f32 %v492, %v509
        %v514 = vrot.slane %v410, 2
        %v515 = vrot.slane %v411, 2
        %v516 = vrot.slane %v412, 2
        %v517 = vrot.slane %v413, 2
        %vm518 = vcmp.lt.s32.totalorder %v421, 6
        %v519 = vsel %vm518, %v516, %v517
        %v520 = vsel %vm518, %v515, %v516
        %v521 = vsel %vm518, %v514, %v515
        %v522 = vsel %vm518, %v517, %v514
        %v523 = vlaneseq
        %v524 = vshrl.u32 %v523, 7
        %v525 = vsub.s32 5, %v524
        %v526 = vrot.slane %v414, %v525
        %v527 = vmul.f32 %v521, %v526
        %v528 = vmul.f32 %v520, %v526
        %v529 = vmul.f32 %v519, %v526
        %v530 = vmul.f32 %v522, %v526
        %v531 = vadd.f32 %v510, %v527
        %v532 = vadd.f32 %v511, %v528
        %v533 = vadd.f32 %v512, %v529
        %v534 = vadd.f32 %v513, %v530
        %v535 = vrot.slane %v410, 3
        %v536 = vrot.slane %v411, 3
        %v537 = vrot.slane %v412, 3
        %v538 = vrot.slane %v413, 3
        %vm539 = vcmp.lt.s32.totalorder %v421, 5
        %v540 = vsel %vm539, %v537, %v538
        %v541 = vsel %vm539, %v536, %v537
        %v542 = vsel %vm539, %v535, %v536
        %v543 = vsel %vm539, %v538, %v535
        %v544 = vlaneseq
        %v545 = vshrl.u32 %v544, 7
        %v546 = vsub.s32 6, %v545
        %v547 = vrot.slane %v414, %v546
        %v548 = vmul.f32 %v542, %v547
        %v549 = vmul.f32 %v541, %v547
        %v550 = vmul.f32 %v540, %v547
        %v551 = vmul.f32 %v543, %v547
        %v552 = vadd.f32 %v531, %v548
        %v553 = vadd.f32 %v532, %v549
        %v554 = vadd.f32 %v533, %v550
        %v555 = vadd.f32 %v534, %v551
        %v557 = vlaneseq
        %v558 = vshrl.u32 %v557, 7
        %v559 = vsub.s32 0, %v558
        %v560 = vrot.slane %v415, %v559
        %v562 = vadd.f32 %v552, %v560
        %v563 = vadd.f32 %v553, %v560
        %v564 = vadd.f32 %v554, %v560
        %v565 = vadd.f32 %v555, %v560
        %v566 = vld [vmem:[#allocation7] sm:$0xff]
        %v567 = vld [vmem:[#allocation7 + $0x8] sm:$0xff]
        %v568 = vld [vmem:[#allocation7 + $0x10] sm:$0xff]
        %v569 = vld [vmem:[#allocation7 + $0x18] sm:$0xff]
        %v570 = vld [vmem:[#allocation7 + $0x20] sm:$0xff]
        %v571 = vld [vmem:[#allocation7 + $0x28] sm:$0xff]
        %v572 = vld [vmem:[#allocation7 + $0x30] sm:$0xff]
        %v573 = vld [vmem:[#allocation7 + $0x38] sm:$0xff]
        %v574 = vld [vmem:[#allocation7 + $0x40] sm:$0xff]
        %v575 = vld [vmem:[#allocation7 + $0x48] sm:$0xff]
        %v576 = vld [vmem:[#allocation7 + $0x50] sm:$0xff]
        %v577 = vld [vmem:[#allocation7 + $0x58] sm:$0xff]
        %v578 = vld [vmem:[#allocation7 + $0x60] sm:$0xff]
        %v579 = vld [vmem:[#allocation7 + $0x68] sm:$0xff]
        %v580 = vld [vmem:[#allocation7 + $0x70] sm:$0xff]
        %v581 = vld [vmem:[#allocation7 + $0x78] sm:$0xff]
        %v582 = vld [vmem:[#allocation7 + $0x80] sm:$0xff]
        %v583 = vld [vmem:[#allocation7 + $0x88] sm:$0xff]
        %v584 = vld [vmem:[#allocation7 + $0x90] sm:$0xff]
        %v585 = vld [vmem:[#allocation7 + $0x98] sm:$0xff]
        %v586 = vld [vmem:[#allocation7 + $0xa0] sm:$0xff]
        %v587 = vld [vmem:[#allocation7 + $0xa8] sm:$0xff]
        %v588 = vld [vmem:[#allocation7 + $0xb0] sm:$0xff]
        %v589 = vld [vmem:[#allocation7 + $0xb8] sm:$0xff]
        %v590 = vld [vmem:[#allocation7 + $0xc0] sm:$0xff]
        %v591 = vld [vmem:[#allocation7 + $0xc8] sm:$0xff]
        %v592 = vld [vmem:[#allocation7 + $0xd0] sm:$0xff]
        %v593 = vld [vmem:[#allocation7 + $0xd8] sm:$0xff]
        %v594 = vld [vmem:[#allocation7 + $0xe0] sm:$0xff]
        %v595 = vld [vmem:[#allocation7 + $0xe8] sm:$0xff]
        %v596 = vld [vmem:[#allocation7 + $0xf0] sm:$0xff]
        %v597 = vld [vmem:[#allocation7 + $0xf8] sm:$0xff]
        %v598 = vld [vmem:[%s4] sm:$0x3]
        %v600 = vlaneseq
        %v601 = vshrl.u32 %v600, 7
        %v602 = vsub.s32 0, %v601
        %v603 = vrot.slane %v598, %v602
        %v604 = vlaneseq
        %v605 = vshrl.u32 %v604, 7
        %v606 = vsub.s32 1, %v605
        %v607 = vrot.slane %v598, %v606
        %610 = vmatprep.subr.mxu0 %v597
        %611 = vmatpush1.msra.mxu0 %v596
        %612 = vmatprep.subr.mxu0 %v595
        %613 = vmatpush1.msra.mxu0 %v594
        %614 = vmatprep.subr.mxu0 %v593
        %615 = vmatpush1.msra.mxu0 %v592
        %616 = vmatprep.subr.mxu0 %v591
        %617 = vmatpush1.msra.mxu0 %v590
        %618 = vmatprep.subr.mxu0 %v589
        %619 = vmatpush1.msra.mxu0 %v588
        %620 = vmatprep.subr.mxu0 %v587
        %621 = vmatpush1.msra.mxu0 %v586
        %622 = vmatprep.subr.mxu0 %v585
        %623 = vmatpush1.msra.mxu0 %v584
        %624 = vmatprep.subr.mxu0 %v583
        %625 = vmatpush1.msra.mxu0 %v582
        %626 = vmatprep.subr.mxu0 %v581
        %627 = vmatpush1.msra.mxu0 %v580
        %628 = vmatprep.subr.mxu0 %v579
        %629 = vmatpush1.msra.mxu0 %v578
        %630 = vmatprep.subr.mxu0 %v577
        %631 = vmatpush1.msra.mxu0 %v576
        %632 = vmatprep.subr.mxu0 %v575
        %633 = vmatpush1.msra.mxu0 %v574
        %634 = vmatprep.subr.mxu0 %v573
        %635 = vmatpush1.msra.mxu0 %v572
        %636 = vmatprep.subr.mxu0 %v571
        %637 = vmatpush1.msra.mxu0 %v570
        %638 = vmatprep.subr.mxu0 %v569
        %639 = vmatpush1.msra.mxu0 %v568
        %640 = vmatprep.subr.mxu0 %v567
        %641 = vmatpush1.msra.mxu0 %v566
        %642 = vmatprep.subr.mxu0 0.0
        %643 = vmatpush2.msra.mxu0 0.0
        %644 = vmatprep.subr.mxu0 0.0
        %645 = vmatpush2.msra.mxu0 0.0
        %646 = vmatprep.subr.mxu0 0.0
        %647 = vmatpush2.msra.mxu0 0.0
        %648 = vmatprep.subr.mxu0 0.0
        %649 = vmatpush2.msra.mxu0 0.0
        %650 = vmatprep.subr.mxu0 0.0
        %651 = vmatpush2.msra.mxu0 0.0
        %652 = vmatprep.subr.mxu0 0.0
        %653 = vmatpush2.msra.mxu0 0.0
        %654 = vmatprep.subr.mxu0 0.0
        %655 = vmatpush2.msra.mxu0 0.0
        %656 = vmatprep.subr.mxu0 0.0
        %657 = vmatpush2.msra.mxu0 0.0
        %658 = vmatprep.subr.mxu0 0.0
        %659 = vmatpush2.msra.mxu0 0.0
        %660 = vmatprep.subr.mxu0 0.0
        %661 = vmatpush2.msra.mxu0 0.0
        %662 = vmatprep.subr.mxu0 0.0
        %663 = vmatpush2.msra.mxu0 0.0
        %664 = vmatprep.subr.mxu0 0.0
        %665 = vmatpush2.msra.mxu0 0.0
        %666 = vmatprep.subr.mxu0 0.0
        %667 = vmatpush2.msra.mxu0 0.0
        %668 = vmatprep.subr.mxu0 0.0
        %669 = vmatpush2.msra.mxu0 0.0
        %670 = vmatprep.subr.mxu0 0.0
        %671 = vmatpush2.msra.mxu0 0.0
        %672 = vmatprep.subr.mxu0 0.0
        %673 = vmatpush2.msra.mxu0 0.0
        %674 = vmatprep.mubr.f32.mxu0 0.0
        %675 = vmatmul.mubr.f32.gmra.mxu0 %v562
        %v676 = vpop.f32.mrf.mxu0
        %v677 = vadd.f32 %v603, %v676
        %v678 = vpop.f32.mrf.mxu0
        %v679 = vadd.f32 %v607, %v678
        %680 = vmatprep.mubr.f32.mxu0 0.0
        %681 = vmatmul.mubr.f32.gmra.mxu0 %v563
        %v682 = vpop.f32.mrf.mxu0
        %v683 = vadd.f32 %v603, %v682
        %v684 = vpop.f32.mrf.mxu0
        %v685 = vadd.f32 %v607, %v684
        %686 = vmatprep.mubr.f32.mxu0 0.0
        %687 = vmatmul.mubr.f32.gmra.mxu0 %v564
        %v688 = vpop.f32.mrf.mxu0
        %v689 = vadd.f32 %v603, %v688
        %v690 = vpop.f32.mrf.mxu0
        %v691 = vadd.f32 %v607, %v690
        %692 = vmatprep.mubr.f32.mxu0 0.0
        %693 = vmatmul.mubr.f32.gmra.mxu0 %v565
        %v694 = vpop.f32.mrf.mxu0
        %v695 = vadd.f32 %v603, %v694
        %v696 = vpop.f32.mrf.mxu0
        %v697 = vadd.f32 %v607, %v696
        %698 = vdwg.mxu0
        %v699 = vmul.f32 %v677, 0.5
        %v700 = vmul.f32 %v683, 0.5
        %v701 = vmul.f32 %v689, 0.5
        %v702 = vmul.f32 %v695, 0.5
        %v703 = vmul.f32 %v677, 0.70710677
        %v704 = vmul.f32 %v683, 0.70710677
        %v705 = vmul.f32 %v689, 0.70710677
        %v706 = vmul.f32 %v695, 0.70710677
        %vm707 = vcmp.ge.f32.partialorder %v703, 0.0
        %vm708 = vcmp.ge.f32.partialorder %v704, 0.0
        %vm709 = vcmp.ge.f32.partialorder %v705, 0.0
        %vm710 = vcmp.ge.f32.partialorder %v706, 0.0
        %v711 = vsel %vm707, 1.0, -1.0
        %v712 = vsel %vm708, 1.0, -1.0
        %v713 = vsel %vm709, 1.0, -1.0
        %v714 = vsel %vm710, 1.0, -1.0
        %v715 = vand.u32 2147483647, %v703
        %v716 = vand.u32 2147483647, %v704
        %v717 = vand.u32 2147483647, %v705
        %v718 = vand.u32 2147483647, %v706
        %v719 = vmul.f32 %v715, 0.3275911
        %v720 = vmul.f32 %v716, 0.3275911
        %v721 = vmul.f32 %v717, 0.3275911
        %v722 = vmul.f32 %v718, 0.3275911
        %v723 = vadd.f32 %v719, 1.0
        %v724 = vadd.f32 %v720, 1.0
        %v725 = vadd.f32 %v721, 1.0
        %v726 = vadd.f32 %v722, 1.0
        %v727 = vrcp.pop %v723
        %v728 = vrcp.pop %v724
        %v729 = vrcp.pop %v725
        %v730 = vrcp.pop %v726
        %v731 = vmul.f32 %v727, 1.0614054
        %v732 = vmul.f32 %v728, 1.0614054
        %v733 = vmul.f32 %v729, 1.0614054
        %v734 = vmul.f32 %v730, 1.0614054
        %v735 = vadd.f32 %v731, -1.4531521
        %v736 = vadd.f32 %v732, -1.4531521
        %v737 = vadd.f32 %v733, -1.4531521
        %v738 = vadd.f32 %v734, -1.4531521
        %v739 = vmul.f32 %v727, %v735
        %v740 = vmul.f32 %v728, %v736
        %v741 = vmul.f32 %v729, %v737
        %v742 = vmul.f32 %v730, %v738
        %v743 = vadd.f32 %v739, 1.4214138
        %v744 = vadd.f32 %v740, 1.4214138
        %v745 = vadd.f32 %v741, 1.4214138
        %v746 = vadd.f32 %v742, 1.4214138
        %v747 = vmul.f32 %v727, %v743
        %v748 = vmul.f32 %v728, %v744
        %v749 = vmul.f32 %v729, %v745
        %v750 = vmul.f32 %v730, %v746
        %v751 = vadd.f32 %v747, -0.28449672
        %v752 = vadd.f32 %v748, -0.28449672
        %v753 = vadd.f32 %v749, -0.28449672
        %v754 = vadd.f32 %v750, -0.28449672
        %v755 = vmul.f32 %v727, %v751
        %v756 = vmul.f32 %v728, %v752
        %v757 = vmul.f32 %v729, %v753
        %v758 = vmul.f32 %v730, %v754
        %v759 = vadd.f32 %v755, 0.2548296
        %v760 = vadd.f32 %v756, 0.2548296
        %v761 = vadd.f32 %v757, 0.2548296
        %v762 = vadd.f32 %v758, 0.2548296
        %v763 = vmul.f32 %v727, %v759
        %v764 = vmul.f32 %v728, %v760
        %v765 = vmul.f32 %v729, %v761
        %v766 = vmul.f32 %v730, %v762
        %v767 = vsub.f32 0.0, %v715
        %v768 = vsub.f32 0.0, %v716
        %v769 = vsub.f32 0.0, %v717
        %v770 = vsub.f32 0.0, %v718
        %v771 = vmul.f32 %v767, %v715
        %v772 = vmul.f32 %v768, %v716
        %v773 = vmul.f32 %v769, %v717
        %v774 = vmul.f32 %v770, %v718
        %v775 = vmul.f32 %v771, 1.442695
        %v776 = vpow.pop %v775
        %v777 = vmul.f32 %v772, 1.442695
        %v778 = vpow.pop %v777
        %v779 = vmul.f32 %v773, 1.442695
        %v780 = vpow.pop %v779
        %v781 = vmul.f32 %v774, 1.442695
        %v782 = vpow.pop %v781
        %v783 = vmul.f32 %v763, %v776
        %v784 = vmul.f32 %v764, %v778
        %v785 = vmul.f32 %v765, %v780
        %v786 = vmul.f32 %v766, %v782
        %v787 = vsub.f32 1.0, %v783
        %v788 = vsub.f32 1.0, %v784
        %v789 = vsub.f32 1.0, %v785
        %v790 = vsub.f32 1.0, %v786
        %v791 = vmul.f32 %v711, %v787
        %v792 = vmul.f32 %v712, %v788
        %v793 = vmul.f32 %v713, %v789
        %v794 = vmul.f32 %v714, %v790
        %v795 = vadd.f32 %v791, 1.0
        %v796 = vadd.f32 %v792, 1.0
        %v797 = vadd.f32 %v793, 1.0
        %v798 = vadd.f32 %v794, 1.0
        %v799 = vmul.f32 %v699, %v795
        %v800 = vmul.f32 %v700, %v796
        %v801 = vmul.f32 %v701, %v797
        %v802 = vmul.f32 %v702, %v798
        %v803 = vadd.f32 %v799, %v679
        %v804 = vadd.f32 %v800, %v685
        %v805 = vadd.f32 %v801, %v691
        %v806 = vadd.f32 %v802, %v697
        %v807 = vld [vmem:[#allocation8] sm:$0xff]
        %v808 = vld [vmem:[#allocation8 + $0x8] sm:$0xff]
        %v809 = vld [vmem:[#allocation8 + $0x10] sm:$0xff]
        %v810 = vld [vmem:[#allocation8 + $0x18] sm:$0xff]
        %v811 = vld [vmem:[#allocation8 + $0x20] sm:$0xff]
        %v812 = vld [vmem:[#allocation8 + $0x28] sm:$0xff]
        %v813 = vld [vmem:[#allocation8 + $0x30] sm:$0xff]
        %v814 = vld [vmem:[#allocation8 + $0x38] sm:$0xff]
        %v815 = vld [vmem:[#allocation8 + $0x40] sm:$0xff]
        %v816 = vld [vmem:[#allocation8 + $0x48] sm:$0xff]
        %v817 = vld [vmem:[#allocation8 + $0x50] sm:$0xff]
        %v818 = vld [vmem:[#allocation8 + $0x58] sm:$0xff]
        %v819 = vld [vmem:[#allocation8 + $0x60] sm:$0xff]
        %v820 = vld [vmem:[#allocation8 + $0x68] sm:$0xff]
        %v821 = vld [vmem:[#allocation8 + $0x70] sm:$0xff]
        %v822 = vld [vmem:[#allocation8 + $0x78] sm:$0xff]
        %v823 = vld [vmem:[%s6] sm:$0x1]
        %v825 = vlaneseq
        %v826 = vshrl.u32 %v825, 7
        %v827 = vsub.s32 0, %v826
        %v828 = vrot.slane %v823, %v827
        %830 = vmatprep.subr.mxu0 0.0
        %831 = vmatpush1.msra.mxu0 %v822
        %832 = vmatprep.subr.mxu0 0.0
        %833 = vmatpush1.msra.mxu0 %v821
        %834 = vmatprep.subr.mxu0 0.0
        %835 = vmatpush1.msra.mxu0 %v820
        %836 = vmatprep.subr.mxu0 0.0
        %837 = vmatpush1.msra.mxu0 %v819
        %838 = vmatprep.subr.mxu0 0.0
        %839 = vmatpush1.msra.mxu0 %v818
        %840 = vmatprep.subr.mxu0 0.0
        %841 = vmatpush1.msra.mxu0 %v817
        %842 = vmatprep.subr.mxu0 0.0
        %843 = vmatpush1.msra.mxu0 %v816
        %844 = vmatprep.subr.mxu0 0.0
        %845 = vmatpush1.msra.mxu0 %v815
        %846 = vmatprep.subr.mxu0 0.0
        %847 = vmatpush1.msra.mxu0 %v814
        %848 = vmatprep.subr.mxu0 0.0
        %849 = vmatpush1.msra.mxu0 %v813
        %850 = vmatprep.subr.mxu0 0.0
        %851 = vmatpush1.msra.mxu0 %v812
        %852 = vmatprep.subr.mxu0 0.0
        %853 = vmatpush1.msra.mxu0 %v811
        %854 = vmatprep.subr.mxu0 0.0
        %855 = vmatpush1.msra.mxu0 %v810
        %856 = vmatprep.subr.mxu0 0.0
        %857 = vmatpush1.msra.mxu0 %v809
        %858 = vmatprep.subr.mxu0 0.0
        %859 = vmatpush1.msra.mxu0 %v808
        %860 = vmatprep.subr.mxu0 0.0
        %861 = vmatpush1.msra.mxu0 %v807
        %862 = vmatprep.subr.mxu0 0.0
        %863 = vmatpush2.msra.mxu0 0.0
        %864 = vmatprep.subr.mxu0 0.0
        %865 = vmatpush2.msra.mxu0 0.0
        %866 = vmatprep.subr.mxu0 0.0
        %867 = vmatpush2.msra.mxu0 0.0
        %868 = vmatprep.subr.mxu0 0.0
        %869 = vmatpush2.msra.mxu0 0.0
        %870 = vmatprep.subr.mxu0 0.0
        %871 = vmatpush2.msra.mxu0 0.0
        %872 = vmatprep.subr.mxu0 0.0
        %873 = vmatpush2.msra.mxu0 0.0
        %874 = vmatprep.subr.mxu0 0.0
        %875 = vmatpush2.msra.mxu0 0.0
        %876 = vmatprep.subr.mxu0 0.0
        %877 = vmatpush2.msra.mxu0 0.0
        %878 = vmatprep.subr.mxu0 0.0
        %879 = vmatpush2.msra.mxu0 0.0
        %880 = vmatprep.subr.mxu0 0.0
        %881 = vmatpush2.msra.mxu0 0.0
        %882 = vmatprep.subr.mxu0 0.0
        %883 = vmatpush2.msra.mxu0 0.0
        %884 = vmatprep.subr.mxu0 0.0
        %885 = vmatpush2.msra.mxu0 0.0
        %886 = vmatprep.subr.mxu0 0.0
        %887 = vmatpush2.msra.mxu0 0.0
        %888 = vmatprep.subr.mxu0 0.0
        %889 = vmatpush2.msra.mxu0 0.0
        %890 = vmatprep.subr.mxu0 0.0
        %891 = vmatpush2.msra.mxu0 0.0
        %892 = vmatprep.subr.mxu0 0.0
        %893 = vmatpush2.msra.mxu0 0.0
        %894 = vmatprep.mubr.f32.mxu0 0.0
        %895 = vmatmul.mubr.f32.gmra.mxu0 %v803
        %v896 = vpop.f32.mrf.mxu0
        %v897 = vadd.f32 %v828, %v896
        %v898 = vpop.f32.mrf.mxu0
        %899 = vmatprep.mubr.f32.mxu0 0.0
        %900 = vmatmul.mubr.f32.gmra.mxu0 %v804
        %v901 = vpop.f32.mrf.mxu0
        %v902 = vadd.f32 %v828, %v901
        %v903 = vpop.f32.mrf.mxu0
        %904 = vmatprep.mubr.f32.mxu0 0.0
        %905 = vmatmul.mubr.f32.gmra.mxu0 %v805
        %v906 = vpop.f32.mrf.mxu0
        %v907 = vadd.f32 %v828, %v906
        %v908 = vpop.f32.mrf.mxu0
        %909 = vmatprep.mubr.f32.mxu0 0.0
        %910 = vmatmul.mubr.f32.gmra.mxu0 %v806
        %v911 = vpop.f32.mrf.mxu0
        %v912 = vadd.f32 %v828, %v911
        %v913 = vpop.f32.mrf.mxu0
        %914 = vdwg.mxu0
        %v915 = vadd.s32 %v421, 8
        %v916 = vadd.s32 %v421, 16
        %v917 = vadd.s32 %v421, 24
        %s918 = ssub.s32 %s408, 8
        %v919 = vstv %s918
        %v920 = vadd.s32 %v421, %v919
        %v921 = vadd.s32 %v915, %v919
        %v922 = vadd.s32 %v916, %v919
        %v923 = vadd.s32 %v917, %v919
        %vm924 = vcmp.ge.s32.totalorder %v920, 0
        %vm925 = vcmp.ge.s32.totalorder %v921, 0
        %vm926 = vcmp.ge.s32.totalorder %v922, 0
        %vm927 = vcmp.ge.s32.totalorder %v923, 0
        %vm928 = vcmp.lt.s32.totalorder %v920, 50
        %vm929 = vcmp.lt.s32.totalorder %v921, 50
        %vm930 = vcmp.lt.s32.totalorder %v922, 50
        %vm931 = vcmp.lt.s32.totalorder %v923, 50
        %vm932 = vmand %vm924, %vm928
        %vm933 = vmand %vm925, %vm929
        %vm934 = vmand %vm926, %vm930
        %vm935 = vmand %vm927, %vm931
        %v936 = vsel %vm932, 1, 0
        %v937 = vsel %vm933, 1, 0
        %v938 = vsel %vm934, 1, 0
        %v939 = vsel %vm935, 1, 0
        %vm940 = vcmp.eq.s32.totalorder %v936, 1
        %vm941 = vcmp.eq.s32.totalorder %v937, 1
        %vm942 = vcmp.eq.s32.totalorder %v938, 1
        %vm943 = vcmp.eq.s32.totalorder %v939, 1
        %v944 = vsel %vm940, %v897, 0.0
        %v945 = vsel %vm941, %v902, 0.0
        %v946 = vsel %vm942, %v907, 0.0
        %v947 = vsel %vm943, %v912, 0.0
        %v948 = vld [vmem:[%s7] sm:$0x7f]
        %v949 = vld [vmem:[%s8] sm:$0x1]
        %v950 = vrot.slane %v944, 5
        %v951 = vrot.slane %v945, 5
        %v952 = vrot.slane %v946, 5
        %v953 = vsel %vm422, %v951, %v952
        %v954 = vsel %vm422, %v950, %v951
        %v955 = vlaneseq
        %v956 = vshrl.u32 %v955, 7
        %v957 = vsub.s32 0, %v956
        %v958 = vrot.slane %v948, %v957
        %v959 = vmul.f32 %v954, %v958
        %v960 = vmul.f32 %v953, %v958
        %v961 = vadd.f32 %v959, 0.0
        %v962 = vadd.f32 %v960, 0.0
        %v963 = vrot.slane %v944, 6
        %v964 = vrot.slane %v945, 6
        %v965 = vrot.slane %v946, 6
        %v966 = vsel %vm443, %v964, %v965
        %v967 = vsel %vm443, %v963, %v964
        %v968 = vlaneseq
        %v969 = vshrl.u32 %v968, 7
        %v970 = vsub.s32 1, %v969
        %v971 = vrot.slane %v948, %v970
        %v972 = vmul.f32 %v967, %v971
        %v973 = vmul.f32 %v966, %v971
        %v974 = vadd.f32 %v961, %v972
        %v975 = vadd.f32 %v962, %v973
        %v976 = vrot.slane %v944, 7
        %v977 = vrot.slane %v945, 7
        %v978 = vrot.slane %v946, 7
        %v979 = vsel %vm464, %v977, %v978
        %v980 = vsel %vm464, %v976, %v977
        %v981 = vlaneseq
        %v982 = vshrl.u32 %v981, 7
        %v983 = vsub.s32 2, %v982
        %v984 = vrot.slane %v948, %v983
        %v985 = vmul.f32 %v980, %v984
        %v986 = vmul.f32 %v979, %v984
        %v987 = vadd.f32 %v974, %v985
        %v988 = vadd.f32 %v975, %v986
        %v989 = vlaneseq
        %v990 = vshrl.u32 %v989, 7
        %v991 = vsub.s32 3, %v990
        %v992 = vrot.slane %v948, %v991
        %v993 = vmul.f32 %v945, %v992
        %v994 = vmul.f32 %v946, %v992
        %v995 = vadd.f32 %v987, %v993
        %v996 = vadd.f32 %v988, %v994
        %v997 = vrot.slane %v945, 1
        %v998 = vrot.slane %v946, 1
        %v999 = vrot.slane %v947, 1
        %v1000 = vsel %vm497, %v998, %v999
        %v1001 = vsel %vm497, %v997, %v998
        %v1002 = vlaneseq
        %v1003 = vshrl.u32 %v1002, 7
        %v1004 = vsub.s32 4, %v1003
        %v1005 = vrot.slane %v948, %v1004
        %v1006 = vmul.f32 %v1001, %v1005
        %v1007 = vmul.f32 %v1000, %v1005
        %v1008 = vadd.f32 %v995, %v1006
        %v1009 = vadd.f32 %v996, %v1007
        %v1010 = vrot.slane %v945, 2
        %v1011 = vrot.slane %v946, 2
        %v1012 = vrot.slane %v947, 2
        %v1013 = vsel %vm518, %v1011, %v1012
        %v1014 = vsel %vm518, %v1010, %v1011
        %v1015 = vlaneseq
        %v1016 = vshrl.u32 %v1015, 7
        %v1017 = vsub.s32 5, %v1016
        %v1018 = vrot.slane %v948, %v1017
        %v1019 = vmul.f32 %v1014, %v1018
        %v1020 = vmul.f32 %v1013, %v1018
        %v1021 = vadd.f32 %v1008, %v1019
        %v1022 = vadd.f32 %v1009, %v1020
        %v1023 = vrot.slane %v945, 3
        %v1024 = vrot.slane %v946, 3
        %v1025 = vrot.slane %v947, 3
        %v1026 = vsel %vm539, %v1024, %v1025
        %v1027 = vsel %vm539, %v1023, %v1024
        %v1028 = vlaneseq
        %v1029 = vshrl.u32 %v1028, 7
        %v1030 = vsub.s32 6, %v1029
        %v1031 = vrot.slane %v948, %v1030
        %v1032 = vmul.f32 %v1027, %v1031
        %v1033 = vmul.f32 %v1026, %v1031
        %v1034 = vadd.f32 %v1021, %v1032
        %v1035 = vadd.f32 %v1022, %v1033
        %v1037 = vlaneseq
        %v1038 = vshrl.u32 %v1037, 7
        %v1039 = vsub.s32 0, %v1038
        %v1040 = vrot.slane %v949, %v1039
        %v1042 = vadd.f32 %v1034, %v1040
        %v1043 = vadd.f32 %v1035, %v1040
        %1044 = vst [vmem:[%s406] sm:$0xff] %v1042
        %1045 = vst [vmem:[%s406 + $0x8] sm:$0xff] %v1043
        %s1046 = sand.u32 %s244, 1
        %s1047 = scalar_lea.sflag [#allocation4], %s1046
        %s1048 = sand.u32 %s244, 1
        %s1049 = smul.addr %s1048, 16
        %s1050 = scalar_lea.vmem [#allocation10], %s1049
        // Predicated region
        $region73: #{tpu_custom_call.1} parent=55 // pred_check
          %p1051 = pneg %p254
        $region74: #{tpu_custom_call.1} parent=55 // pred_check_branch
          %1053 = sbr.rel (%p1051) target = $region76
        $region75: #{tpu_custom_call.1} parent=55 // pred_region
          %s1054 = smul.u32 2, %s33
          %s1056 = ssub.s32 256, 256
          %1057 = vsyncadd %s1047, %s1056
          %s1058 = smul.addr %s32, 8
          %s1059 = sadd.s32 %s1054, %s1058
          %s1060 = smul.addr %s1059, 128
          %s1061 = scalar_lea.hbm %s9, %s1060
          %s1062 = sshll.u32 %s1050, 4
          %s1063 = int_to_ptr.vmem [resolvable:$true] %s1062
          %1068 = dma.vmem_to_hbm [thread:$0]  %s1063, 256, %s1061, %s1047, 128, 128, 8
        $region76: #{tpu_custom_call.1} parent=55 // pred_fallthru
          _
      $region56: #{tpu_custom_call.1} parent=5 // pred_fallthru
        _
      %p1069 = scmp.le.s32.totalorder 2, %s23
      // Predicated region
      $region77: #{tpu_custom_call.1} parent=5 // pred_check
        %p1070 = pneg %p1069
      $region78: #{tpu_custom_call.1} parent=5 // pred_check_branch
        %1072 = sbr.rel (%p1070) target = $region80
      $region79: #{tpu_custom_call.1} parent=5 // pred_region
        %s1073 = ssub.s32 %s23, 2
        // Predicated region
        $region81: #{tpu_custom_call.1} parent=79 // pred_check
          %p1074 = pneg %p260
        $region82: #{tpu_custom_call.1} parent=79 // pred_check_branch
          %1076 = sbr.rel (%p1074) target = $region84
        $region83: #{tpu_custom_call.1} parent=79 // pred_region
          %s1077 = sand.u32 %s245, 1
          %s1078 = scalar_lea.sflag [#allocation4], %s1077
          %s1079 = sand.u32 %s245, 1
          %s1080 = smul.addr %s1079, 16
          %s1081 = scalar_lea.vmem [#allocation10], %s1080
          %1082 = dma.done %s1078, 256
        $region84: #{tpu_custom_call.1} parent=79 // pred_fallthru
          _
      $region80: #{tpu_custom_call.1} parent=5 // pred_fallthru
        _
    $region6: #{tpu_custom_call.1} parent=1 // loop_footer
      %s27 = sadd.s32 1, %s23
    $region7: #{tpu_custom_call.1} parent=1 // loop_footer_branch
      %22 = sbr.rel target = $region3
    $region8: #{tpu_custom_call.1} parent=1 // loop_exit
      _
    %1083 = vsyncpa [#allocation3], 1
    %s1084 = scalar_lea.sflag [#allocation3], 1
    %1085 = vsyncpa %s1084, 1
    %1086 = vsyncpa [#allocation6], 1
    %1087 = vsyncpa [#allocation9], 1
    %1088 = vsyncpa [#allocation4], 1
    %s1089 = scalar_lea.sflag [#allocation4], 1
    %1090 = vsyncpa %s1089, 1

</llo_original>
